<compile_context>
chip_gen: v7x
topology: tpu7x:2x2x1
jax: 0.10.0
libtpu: 0.0.40
codegen_flags: <defaults>
</compile_context>

<pallas_src>
import functools

import jax
import jax.numpy as jnp
from jax import lax
from jax.experimental import pallas as pl
from jax.experimental.pallas import tpu as pltpu


def _round_up(x, m):
    return ((x + m - 1) // m) * m


# ---------------------------------------------------------------------------
# Stage 1: fused qkv projection  (N_pad, C) @ (C, 3C) -> (N_pad, 3C), bf16 out.
# (the softmax scale is pre-folded into the q-columns of the weight)
# ---------------------------------------------------------------------------
def _qkv_proj_kernel(x_ref, w_ref, o_ref):
    o_ref[...] = jnp.dot(
        x_ref[...], w_ref[...], preferred_element_type=jnp.float32
    ).astype(o_ref.dtype)


# ---------------------------------------------------------------------------
# Stage 2: flash attention (online softmax, resident K/V) + fused projection.
#   q_ref: (H, tq, d) bf16        k_ref / v_ref: (H, N_pad, d) bf16 (resident)
#   wp_ref: (C, C) bf16           bp_ref: (1, C) f32          o_ref: (tq, C)
#   scratch: m_sc / l_sc (H, tq, 1) f32, acc_sc (H, tq, d) f32,
#            ctx_sc (tq, C) bf16  (lane-dense packed context)
# ---------------------------------------------------------------------------
def _flash_attn_proj_kernel(q_ref, k_ref, v_ref, wp_ref, bp_ref, o_ref,
                            m_sc, l_sc, acc_sc, ctx_sc, *, block_k, n_valid):
    num_heads, tq, d = q_ref.shape
    n_kv_pad = k_ref.shape[1]
    num_kv = n_kv_pad // block_k
    needs_mask = n_valid < n_kv_pad          # static (trace-time) flag

    m_sc[...] = jnp.full_like(m_sc, -jnp.inf)
    l_sc[...] = jnp.zeros_like(l_sc)
    acc_sc[...] = jnp.zeros_like(acc_sc)

    q = q_ref[...]                           # loop-invariant; load once

    def kv_step(kv, carry):
        off = pl.multiple_of(kv * block_k, block_k)
        k_blk = k_ref[:, pl.ds(off, block_k), :]             # (H, tk, d) bf16
        v_blk = v_ref[:, pl.ds(off, block_k), :]             # (H, tk, d) bf16

        # Head-batched scores, contraction over d (no materialized transpose).
        # Scale already folded into q via the qkv weight.
        s = jnp.einsum("hqd,hkd->hqk", q, k_blk,
                       preferred_element_type=jnp.float32)   # (H, tq, tk) f32
        if needs_mask:
            kv_idx = off + lax.broadcasted_iota(jnp.int32, (1, 1, block_k), 2)
            s = jnp.where(kv_idx < n_valid, s, jnp.float32(-1e30))

        m_prev = m_sc[...]
        m_new = jnp.maximum(m_prev, jnp.max(s, axis=-1, keepdims=True))
        alpha = jnp.exp(m_prev - m_new)
        p = jnp.exp(s - m_new)                                # (H, tq, tk) f32

        l_sc[...] = alpha * l_sc[...] + jnp.sum(p, axis=-1, keepdims=True)
        pv = jnp.einsum("hqk,hkd->hqd", p.astype(v_blk.dtype), v_blk,
                        preferred_element_type=jnp.float32)   # (H, tq, d) f32
        acc_sc[...] = alpha * acc_sc[...] + pv
        m_sc[...] = m_new
        return carry

    lax.fori_loop(0, num_kv, kv_step, 0, unroll=(num_kv <= 4))

    # Normalize and pack the per-head context lane-dense into (tq, C) without
    # materializing an (H, tq, C) f32 intermediate (the vreg-spill in review).
    inv_l = pl.reciprocal(l_sc[...], approx=True)             # (H, tq, 1) EUP
    for h in range(num_heads):                                # static unroll
        ctx_sc[:, h * d:(h + 1) * d] = (acc_sc[h] * inv_l[h]).astype(ctx_sc.dtype)

    # Fused output projection: one matmul with full-C contraction + bias.
    out = jnp.dot(ctx_sc[...], wp_ref[...],
                  preferred_element_type=jnp.float32) + bp_ref[...]
    o_ref[...] = out.astype(o_ref.dtype)                      # lane-dense store


# ---------------------------------------------------------------------------
# Wrapper
# ---------------------------------------------------------------------------
def attention_forward(x, w_qkv_t, w_proj_t, b_proj, *, num_heads,
                      block_q=128, block_k=256):
    """x: (N, C) f32.  Weights pre-transposed to (in, out).  Returns (N, C)."""
    N, C = x.shape
    assert C % num_heads == 0
    assert block_q % 128 == 0 and block_k % 128 == 0
    d = C // num_heads
    scale = float(d) ** -0.5

    # Fold the softmax scale into the q-columns of the qkv weight (in f32).
    col_scale = jnp.concatenate(
        [jnp.full((C,), scale, jnp.float32), jnp.ones((2 * C,), jnp.float32)])
    wqkv = (w_qkv_t.astype(jnp.float32) * col_scale[None, :]).astype(jnp.bfloat16)
    wproj = w_proj_t.astype(jnp.bfloat16)                 # (C, C)
    bproj = b_proj.reshape(1, C).astype(jnp.float32)      # (1, C)

    # Pad N to a multiple of 128 (padded keys are masked, rows sliced off).
    N_pad = _round_up(N, 128)
    xb = x.astype(jnp.bfloat16)
    if N_pad != N:
        xb = jnp.pad(xb, ((0, N_pad - N), (0, 0)))

    vmem_limit = 48 * 1024 * 1024   # headroom vs. v7x's 64 MiB physical VMEM

    # -------- stage 1: qkv projection --------
    tm = 256 if N_pad % 256 == 0 else 128
    tn = C if C % 128 == 0 else 3 * C
    qkv = pl.pallas_call(
        _qkv_proj_kernel,
        out_shape=jax.ShapeDtypeStruct((N_pad, 3 * C), jnp.bfloat16),
        grid_spec=pltpu.PrefetchScalarGridSpec(
            num_scalar_prefetch=0,
            grid=(N_pad // tm, (3 * C) // tn),
            in_specs=[
                pl.BlockSpec((tm, C), lambda i, j: (i, 0)),
                pl.BlockSpec((C, tn), lambda i, j: (0, j)),
            ],
            out_specs=pl.BlockSpec((tm, tn), lambda i, j: (i, j)),
        ),
        compiler_params=pltpu.CompilerParams(
            dimension_semantics=("parallel", "parallel"),
            vmem_limit_bytes=vmem_limit),
        cost_estimate=pl.CostEstimate(
            flops=2 * N_pad * C * 3 * C,
            transcendentals=0,
            bytes_accessed=2 * (N_pad * C + C * 3 * C + N_pad * 3 * C)),
    )(xb, wqkv)

    # Head-major split: single wrapper-side XLA transpose (layout plumbing).
    qkv = qkv.reshape(N_pad, 3, num_heads, d).transpose(1, 2, 0, 3)  # (3,H,N,d)
    q, k, v = qkv[0], qkv[1], qkv[2]                                 # (H,N_pad,d)

    # -------- stage 2: flash attention (resident K/V) + fused projection ----
    tq = block_q if N_pad % block_q == 0 else 128
    tk = block_k if N_pad % block_k == 0 else 128

    kernel = functools.partial(_flash_attn_proj_kernel, block_k=tk, n_valid=N)
    out_pad = pl.pallas_call(
        kernel,
        out_shape=jax.ShapeDtypeStruct((N_pad, C), x.dtype),
        grid_spec=pltpu.PrefetchScalarGridSpec(
            num_scalar_prefetch=0,
            grid=(N_pad // tq,),
            in_specs=[
                pl.BlockSpec((num_heads, tq, d), lambda qi: (0, qi, 0)),
                pl.BlockSpec((num_heads, N_pad, d), lambda qi: (0, 0, 0)),
                pl.BlockSpec((num_heads, N_pad, d), lambda qi: (0, 0, 0)),
                pl.BlockSpec((C, C), lambda qi: (0, 0)),
                pl.BlockSpec((1, C), lambda qi: (0, 0)),
            ],
            out_specs=pl.BlockSpec((tq, C), lambda qi: (qi, 0)),
            scratch_shapes=[
                pltpu.VMEM((num_heads, tq, 1), jnp.float32),   # m
                pltpu.VMEM((num_heads, tq, 1), jnp.float32),   # l
                pltpu.VMEM((num_heads, tq, d), jnp.float32),   # acc
                pltpu.VMEM((tq, C), jnp.bfloat16),             # packed ctx
            ],
        ),
        compiler_params=pltpu.CompilerParams(
            dimension_semantics=("parallel",),
            vmem_limit_bytes=vmem_limit),
        cost_estimate=pl.CostEstimate(
            flops=4 * num_heads * N_pad * N_pad * d + 2 * N_pad * C * C,
            transcendentals=num_heads * N_pad * N_pad,
            bytes_accessed=2 * (3 * N_pad * C + C * C) + 4 * N_pad * C),
    )(q, k, v, wproj, bproj)

    return out_pad[:N] if N_pad != N else out_pad


# ---------------------------------------------------------------------------
# Pure-JAX reference mirroring the PyTorch module (same mixed precision).
# ---------------------------------------------------------------------------
def attention_reference(x, w_qkv_t, w_proj_t, b_proj, *, num_heads):
    N, C = x.shape
    d = C // num_heads
    scale = float(d) ** -0.5
    xb = x.astype(jnp.bfloat16)
    qkv = jnp.dot(xb, w_qkv_t.astype(jnp.bfloat16),
                  preferred_element_type=jnp.float32).astype(jnp.bfloat16)
    qkv = qkv.reshape(N, 3, num_heads, d).transpose(1, 2, 0, 3)   # (3, H, N, d)
    q, k, v = qkv[0], qkv[1], qkv[2]
    s = jnp.einsum("hnd,hmd->hnm", q, k,
                   preferred_element_type=jnp.float32) * scale
    p = jax.nn.softmax(s, axis=-1)
    ctx = jnp.einsum("hnm,hmd->hnd", p.astype(jnp.bfloat16), v,
                     preferred_element_type=jnp.float32)
    ctx = jnp.transpose(ctx, (1, 0, 2)).reshape(N, C).astype(jnp.bfloat16)
    out = jnp.dot(ctx, w_proj_t.astype(jnp.bfloat16),
                  preferred_element_type=jnp.float32)
    return out + b_proj.reshape(1, C)


if __name__ == "__main__":
    root = jax.random.PRNGKey(0)

    def run_case(key, n_tokens, dim, num_heads):
        kx, kqkv, kproj, kb = jax.random.split(key, 4)
        x = jax.random.normal(kx, (n_tokens, dim), dtype=jnp.float32)
        # Parameters stored pre-transposed: (in_features, out_features).
        w_qkv_t = jax.random.normal(kqkv, (dim, 3 * dim), jnp.float32) * 0.03
        w_proj_t = jax.random.normal(kproj, (dim, dim), jnp.float32) * 0.03
        b_proj = jax.random.normal(kb, (dim,), jnp.float32) * 0.03

        out = attention_forward(x, w_qkv_t, w_proj_t, b_proj,
                                num_heads=num_heads)
        out = jax.block_until_ready(out)
        ref = attention_reference(x, w_qkv_t, w_proj_t, b_proj,
                                  num_heads=num_heads)
        assert out.shape == (n_tokens, dim)
        err = float(jnp.max(jnp.abs(out - ref)))
        assert jnp.allclose(out, ref, atol=2e-2, rtol=2e-2), err

    k1, k2 = jax.random.split(root)
    # ViT-S-like tokens: N = 14*14 + 1 = 197 -> exercises padding + key mask.
    run_case(k1, 197, 384, 6)
    # Divisible case (unmasked path), head_dim = 32.
    run_case(k2, 256, 256, 8)

    print("KERNEL_OK")
</pallas_src>

<mosaic_0001>
module attributes {stable_mosaic.version = 11 : i64} {
  func.func @_qkv_proj_kernel(%arg0: i32, %arg1: i32, %arg2: memref<256x384xbf16, #tpu.memory_space<vmem>>, %arg3: memref<384x384xbf16, #tpu.memory_space<vmem>>, %arg4: memref<256x384xbf16, #tpu.memory_space<vmem>>) attributes {dimension_semantics = [#tpu.dimension_semantics<parallel>, #tpu.dimension_semantics<parallel>], iteration_bounds = array<i64: 1, 3>, scalar_prefetch = 0 : i64, scratch_operands = 0 : i64, tpu.core_type = #tpu.core_type<tc>, window_params = [{transform_indices = @transform_0, window_bounds = array<i64: 256, 384>}, {transform_indices = @transform_1, window_bounds = array<i64: 384, 384>}, {transform_indices = @transform_2, window_bounds = array<i64: 256, 384>}]} {
    %c0 = arith.constant 0 : index
    %c0_0 = arith.constant 0 : index
    %0 = vector.load %arg2[%c0, %c0_0] : memref<256x384xbf16, #tpu.memory_space<vmem>>, vector<256x384xbf16>
    %c0_1 = arith.constant 0 : index
    %c0_2 = arith.constant 0 : index
    %1 = vector.load %arg3[%c0_1, %c0_2] : memref<384x384xbf16, #tpu.memory_space<vmem>>, vector<384x384xbf16>
    %cst = arith.constant dense<0.000000e+00> : vector<256x384xf32>
    %2 = tpu.matmul %0, %1, %cst {dimension_numbers = #tpu.dot_dimension_numbers<[1], [0], [0], [1], [0, 0, 1, 1], [], []>} : vector<256x384xbf16>, vector<384x384xbf16>, vector<256x384xf32> -> vector<256x384xf32>
    %3 = arith.truncf %2 : vector<256x384xf32> to vector<256x384xbf16>
    %c0_3 = arith.constant 0 : index
    %c0_4 = arith.constant 0 : index
    %4 = vector.load %arg4[%c0_3, %c0_4] : memref<256x384xbf16, #tpu.memory_space<vmem>>, vector<256x384xbf16>
    tpu.vector_store %arg4[%c0_3, %c0_4], %3 {strides = array<i32>} : memref<256x384xbf16, #tpu.memory_space<vmem>>, vector<256x384xbf16>,
    return
  }
  func.func @transform_0(%arg0: i32, %arg1: i32) -> (i32, i32) {
    %c0_i32 = arith.constant 0 : i32
    %c0_i32_0 = arith.constant 0 : i32
    return %arg0, %c0_i32 : i32, i32
  }
  func.func @transform_1(%arg0: i32, %arg1: i32) -> (i32, i32) {
    %c0_i32 = arith.constant 0 : i32
    %c0_i32_0 = arith.constant 0 : i32
    return %c0_i32, %arg1 : i32, i32
  }
  func.func @transform_2(%arg0: i32, %arg1: i32) -> (i32, i32) {
    %c0_i32 = arith.constant 0 : i32
    return %arg0, %arg1 : i32, i32
  }
}

</mosaic_0001>

<llo_original>
// kernel: tpu_custom_call.1
$region0: #{tpu_custom_call.1}
  #allocation0 [shape = 'u32[]', space=smem, size = 0x4, offset = 0x4, fixed_abs, tag = 'smem constant byte address 0x4 - core index']
  #allocation1 [shape = 'u32[144,128]{1,0:T(1,128)}', space=vmem, size = 0x12000, scoped, tag = 'internal scratch']
  %s0 = inlined_call_operand.hbm [shape: bf16[256,384], index: 0, kind: input, shape index: {}]
  %s1 = inlined_call_operand.hbm [shape: bf16[384,1152], index: 1, kind: input, shape index: {}]
  %s2 = inlined_call_operand.hbm [shape: bf16[256,1152], index: 2, kind: output, shape index: {}]
  %s3 = sld [smem:[#allocation0]]
  $region49: #{tpu_custom_call.1} parent=0
    _
  %s5 = ssub.s32 1, %s3
  %s6 = scalar_select 0, %s5, %s3
  $region1: #{tpu_custom_call.1} parent=0
    #allocation2 [shape = 'u8[196608]{0}', space=vmem, size = 0x30000, scoped, tag = 'input window, operand 0, single buffered']
    #allocation3 [shape = 's32[2]{0}', space=sflag, size = 0x8, scoped, tag = 'scoped memory for tpu_custom_call.1']
    #allocation4 [shape = 's32[2]{0}', space=sflag, size = 0x8, scoped, tag = 'scoped memory for tpu_custom_call.1']
    #allocation5 [shape = 'u8[589824]{0}', space=vmem, size = 0x90000, scoped, tag = 'input window, operand 1']
    #allocation6 [shape = 's32[2]{0}', space=sflag, size = 0x8, scoped, tag = 'scoped memory for tpu_custom_call.1']
    #allocation7 [shape = 'u8[393216]{0}', space=vmem, size = 0x60000, scoped, tag = 'output window, operand 0']
    %7 = vsyncpa [#allocation3], 0
    %8 = vsyncpa [#allocation6], 0
    %s9 = scalar_lea.sflag [#allocation6], 1
    %10 = vsyncpa %s9, 0
    %11 = vsyncpa [#allocation4], 0
    %s12 = scalar_lea.sflag [#allocation4], 1
    %13 = vsyncpa %s12, 0
    loop: start=0, step=1, limit=5
    $region2: #{tpu_custom_call.1} parent=1 // loop_pre_header
      _
    $region3: #{tpu_custom_call.1} parent=1 // loop_header
      %s15 = sphi 0, %s19
      %p16 = scmp.ge.s32.totalorder %s15, 5
      %s22 = sphi 0, %s34
      %s23 = sphi 0, %s30
      %s24 = sphi 0, %s22
      %s25 = sphi 0, %s23
      %s26 = sphi 0, %s24
      %s27 = sphi 0, %s25
      %s37 = sphi 0, %s39
      %s40 = sphi 0, %s37
      %s41 = sphi 0, %s40
      %s57 = sphi 0, %s41
      %s63 = sphi 0, %s65
      %s66 = sphi 0, %s63
      %s67 = sphi 0, %s66
      %s83 = sphi 0, %s67
      %s91 = sphi 0, %s93
      %s94 = sphi 0, %s91
      %s95 = sphi 0, %s94
      %s111 = sphi 0, %s95
    $region4: #{tpu_custom_call.1} parent=1 // loop_header_branch
      %18 = sbr.rel (%p16) target = $region8
    $region5: #{tpu_custom_call.1} parent=1 // loop_body
      %s20 = ssub.s32 %s15, 1
      %s21 = ssub.s32 %s15, 2
      %s28 = sadd.s32 1, %s23
      %p29 = scmp.ge.s32.totalorder %s28, 3
      %s30 = scalar_select %p29, 0, %s28
      %s31 = sadd.s32 1, %s22
      %s32 = scalar_select %p29, %s31, %s22
      %p33 = scmp.ge.s32.totalorder %s32, 1
      %s34 = scalar_select %p33, 0, %s32
      %s35 = ssub.s32 %s22, %s34
      %p36 = scmp.eq.s32.totalorder %s35, 0
      %s38 = sadd.s32 %s37, 1
      %s39 = scalar_select %p36, %s37, %s38
      %p42 = pneg %p36
      %p43 = scmp.eq.s32.totalorder %s15, 2
      %p44 = por %p42, %p43
      %p45 = scmp.ne.s32.totalorder %s37, %s40
      %p46 = scmp.eq.s32.totalorder %s15, 0
      %p47 = por %p45, %p46
      %p48 = scmp.ne.s32.totalorder %s37, %s40
      %p49 = scmp.eq.s32.totalorder %s20, 2
      %p50 = por %p48, %p49
      %p51 = scmp.ne.s32.totalorder %s40, %s41
      %p52 = scmp.eq.s32.totalorder %s20, 0
      %p53 = por %p51, %p52
      %p54 = scmp.ne.s32.totalorder %s40, %s41
      %p55 = scmp.eq.s32.totalorder %s21, 2
      %p56 = por %p54, %p55
      %p58 = scmp.ne.s32.totalorder %s41, %s57
      %p59 = scmp.eq.s32.totalorder %s21, 0
      %p60 = por %p58, %p59
      %s61 = ssub.s32 %s23, %s30
      %p62 = scmp.eq.s32.totalorder %s61, 0
      %s64 = sadd.s32 %s63, 1
      %s65 = scalar_select %p62, %s63, %s64
      %p68 = pneg %p62
      %p69 = scmp.eq.s32.totalorder %s15, 2
      %p70 = por %p68, %p69
      %p71 = scmp.ne.s32.totalorder %s63, %s66
      %p72 = scmp.eq.s32.totalorder %s15, 0
      %p73 = por %p71, %p72
      %p74 = scmp.ne.s32.totalorder %s63, %s66
      %p75 = scmp.eq.s32.totalorder %s20, 2
      %p76 = por %p74, %p75
      %p77 = scmp.ne.s32.totalorder %s66, %s67
      %p78 = scmp.eq.s32.totalorder %s20, 0
      %p79 = por %p77, %p78
      %p80 = scmp.ne.s32.totalorder %s66, %s67
      %p81 = scmp.eq.s32.totalorder %s21, 2
      %p82 = por %p80, %p81
      %p84 = scmp.ne.s32.totalorder %s67, %s83
      %p85 = scmp.eq.s32.totalorder %s21, 0
      %p86 = por %p84, %p85
      %s87 = ssub.s32 %s22, %s34
      %s88 = ssub.s32 %s23, %s30
      %s89 = sor.u32 %s87, %s88
      %p90 = scmp.eq.s32.totalorder %s89, 0
      %s92 = sadd.s32 %s91, 1
      %s93 = scalar_select %p90, %s91, %s92
      %p96 = pneg %p90
      %p97 = scmp.eq.s32.totalorder %s15, 2
      %p98 = por %p96, %p97
      %p99 = scmp.ne.s32.totalorder %s91, %s94
      %p100 = scmp.eq.s32.totalorder %s15, 0
      %p101 = por %p99, %p100
      %p102 = scmp.ne.s32.totalorder %s91, %s94
      %p103 = scmp.eq.s32.totalorder %s20, 2
      %p104 = por %p102, %p103
      %p105 = scmp.ne.s32.totalorder %s94, %s95
      %p106 = scmp.eq.s32.totalorder %s20, 0
      %p107 = por %p105, %p106
      %p108 = scmp.ne.s32.totalorder %s94, %s95
      %p109 = scmp.eq.s32.totalorder %s21, 2
      %p110 = por %p108, %p109
      %p112 = scmp.ne.s32.totalorder %s95, %s111
      %p113 = scmp.eq.s32.totalorder %s21, 0
      %p114 = por %p112, %p113
      %p115 = scmp.le.s32.totalorder 1, %s15
      %p116 = scmp.lt.s32.totalorder %s15, 4
      %p117 = pnand %p115, %p116
      %p118 = pneg %p117
      // Predicated region
      $region9: #{tpu_custom_call.1} parent=5 // pred_check
        _
      $region10: #{tpu_custom_call.1} parent=5 // pred_check_branch
        %120 = sbr.rel (%p117) target = $region12
      $region11: #{tpu_custom_call.1} parent=5 // pred_region
        %s121 = ssub.s32 %s15, 1
        // Predicated region
        $region13: #{tpu_custom_call.1} parent=11 // pred_check
          %p122 = pneg %p53
        $region14: #{tpu_custom_call.1} parent=11 // pred_check_branch
          %124 = sbr.rel (%p122) target = $region16
        $region15: #{tpu_custom_call.1} parent=11 // pred_region
          %s125 = smul.u32 32, %s24
          %s127 = ssub.s32 6144, 6144
          %128 = vsyncadd [#allocation3], %s127
          %s129 = smul.addr %s125, 3
          %s130 = smul.addr %s129, 64
          %s131 = scalar_lea.hbm %s0, %s130
          %s132 = sshll.u32 [#allocation2], 4
          %s133 = int_to_ptr.vmem [resolvable:$true] %s132
          %138 = dma.hbm_to_vmem [thread:$0]  %s131, 6144, %s133, [#allocation3], 192, 192, 12
        $region16: #{tpu_custom_call.1} parent=11 // pred_fallthru
          _
      $region12: #{tpu_custom_call.1} parent=5 // pred_fallthru
        _
      %p139 = scmp.lt.s32.totalorder %s15, 3
      // Predicated region
      $region17: #{tpu_custom_call.1} parent=5 // pred_check
        %p140 = pneg %p139
      $region18: #{tpu_custom_call.1} parent=5 // pred_check_branch
        %142 = sbr.rel (%p140) target = $region20
      $region19: #{tpu_custom_call.1} parent=5 // pred_region
        // Predicated region
        $region21: #{tpu_custom_call.1} parent=19 // pred_check
          %p143 = pneg %p73
        $region22: #{tpu_custom_call.1} parent=19 // pred_check_branch
          %145 = sbr.rel (%p143) target = $region24
        $region23: #{tpu_custom_call.1} parent=19 // pred_region
          %s146 = sand.u32 %s63, 1
          %s147 = scalar_lea.sflag [#allocation6], %s146
          %s148 = sand.u32 %s63, 1
          %s149 = smul.addr %s148, 576
          %s150 = scalar_lea.vmem [#allocation5], %s149
          %s151 = smul.u32 3, %s23
          %s153 = ssub.s32 9216, 9216
          %154 = vsyncadd %s147, %s153
          %s155 = smul.addr %s151, 64
          %s156 = scalar_lea.hbm %s1, %s155
          %s157 = sshll.u32 %s150, 4
          %s158 = int_to_ptr.vmem [resolvable:$true] %s157
          %163 = dma.hbm_to_vmem [thread:$0]  %s156, 9216, %s158, %s147, 576, 192, 12
        $region24: #{tpu_custom_call.1} parent=19 // pred_fallthru
          _
      $region20: #{tpu_custom_call.1} parent=5 // pred_fallthru
        _
      %p164 = scmp.le.s32.totalorder 1, %s15
      %p165 = scmp.lt.s32.totalorder %s15, 4
      %p166 = pnand %p164, %p165
      %p167 = pneg %p166
      // Predicated region
      $region25: #{tpu_custom_call.1} parent=5 // pred_check
        _
      $region26: #{tpu_custom_call.1} parent=5 // pred_check_branch
        %169 = sbr.rel (%p166) target = $region28
      $region27: #{tpu_custom_call.1} parent=5 // pred_region
        %s170 = ssub.s32 %s15, 1
        // Predicated region
        $region29: #{tpu_custom_call.1} parent=27 // pred_check
          %p171 = pneg %p53
        $region30: #{tpu_custom_call.1} parent=27 // pred_check_branch
          %173 = sbr.rel (%p171) target = $region32
        $region31: #{tpu_custom_call.1} parent=27 // pred_region
          %174 = dma.done [#allocation3], 6144
        $region32: #{tpu_custom_call.1} parent=27 // pred_fallthru
          _
        %s175 = sand.u32 %s66, 1
        %s176 = scalar_lea.sflag [#allocation6], %s175
        %s177 = sand.u32 %s66, 1
        %s178 = smul.addr %s177, 576
        %s179 = scalar_lea.vmem [#allocation5], %s178
        // Predicated region
        $region33: #{tpu_custom_call.1} parent=27 // pred_check
          %p180 = pneg %p79
        $region34: #{tpu_custom_call.1} parent=27 // pred_check_branch
          %182 = sbr.rel (%p180) target = $region36
        $region35: #{tpu_custom_call.1} parent=27 // pred_region
          %183 = dma.done %s176, 9216
        $region36: #{tpu_custom_call.1} parent=27 // pred_fallthru
          _
        %p184 = pneg %p53
        %p185 = pneg %p50
        %s186 = sand.u32 %s66, 1
        %s187 = scalar_lea.sflag [#allocation6], %s186
        %s188 = sand.u32 %s66, 1
        %s189 = smul.addr %s188, 576
        %s190 = scalar_lea.vmem [#allocation5], %s189
        %p191 = pneg %p79
        %p192 = pneg %p76
        %p193 = pneg %p107
        %p194 = pneg %p104
        %s195 = sand.u32 %s94, 1
        %s196 = scalar_lea.sflag [#allocation4], %s195
        %s197 = sand.u32 %s94, 1
        %s198 = smul.addr %s197, 384
        %s199 = scalar_lea.vmem [#allocation7], %s198
        %s200 = smul.u32 32, %s24
        %s201 = smul.u32 3, %s25
        %s202 = smul.u32 32, %s24
        %s203 = smul.u32 3, %s25
        %v205 = vld [vmem:[#allocation2] sm:$0xff]
        %v206 = vld [vmem:[#allocation2 + $0x8] sm:$0xf]
        %v207 = vld [vmem:[#allocation2 + $0xc] sm:$0xff]
        %v208 = vld [vmem:[#allocation2 + $0x14] sm:$0xf]
        %v209 = vld [vmem:[#allocation2 + $0x18] sm:$0xff]
        %v210 = vld [vmem:[#allocation2 + $0x20] sm:$0xf]
        %v211 = vld [vmem:[#allocation2 + $0x24] sm:$0xff]
        %v212 = vld [vmem:[#allocation2 + $0x2c] sm:$0xf]
        %v213 = vld [vmem:[#allocation2 + $0x30] sm:$0xff]
        %v214 = vld [vmem:[#allocation2 + $0x38] sm:$0xf]
        %v215 = vld [vmem:[#allocation2 + $0x3c] sm:$0xff]
        %v216 = vld [vmem:[#allocation2 + $0x44] sm:$0xf]
        %v217 = vld [vmem:[#allocation2 + $0x48] sm:$0xff]
        %v218 = vld [vmem:[#allocation2 + $0x50] sm:$0xf]
        %v219 = vld [vmem:[#allocation2 + $0x54] sm:$0xff]
        %v220 = vld [vmem:[#allocation2 + $0x5c] sm:$0xf]
        %v221 = vld [vmem:[#allocation2 + $0x60] sm:$0xff]
        %v222 = vld [vmem:[#allocation2 + $0x68] sm:$0xf]
        %v223 = vld [vmem:[#allocation2 + $0x6c] sm:$0xff]
        %v224 = vld [vmem:[#allocation2 + $0x74] sm:$0xf]
        %v225 = vld [vmem:[#allocation2 + $0x78] sm:$0xff]
        %v226 = vld [vmem:[#allocation2 + $0x80] sm:$0xf]
        %v227 = vld [vmem:[#allocation2 + $0x84] sm:$0xff]
        %v228 = vld [vmem:[#allocation2 + $0x8c] sm:$0xf]
        %v229 = vld [vmem:[#allocation2 + $0x90] sm:$0xff]
        %v230 = vld [vmem:[#allocation2 + $0x98] sm:$0xf]
        %v231 = vld [vmem:[#allocation2 + $0x9c] sm:$0xff]
        %v232 = vld [vmem:[#allocation2 + $0xa4] sm:$0xf]
        %v233 = vld [vmem:[#allocation2 + $0xa8] sm:$0xff]
        %v234 = vld [vmem:[#allocation2 + $0xb0] sm:$0xf]
        %v235 = vld [vmem:[#allocation2 + $0xb4] sm:$0xff]
        %v236 = vld [vmem:[#allocation2 + $0xbc] sm:$0xf]
        %v237 = vld [vmem:[#allocation2 + $0xc0] sm:$0xff]
        %v238 = vld [vmem:[#allocation2 + $0xc8] sm:$0xf]
        %v239 = vld [vmem:[#allocation2 + $0xcc] sm:$0xff]
        %v240 = vld [vmem:[#allocation2 + $0xd4] sm:$0xf]
        %v241 = vld [vmem:[#allocation2 + $0xd8] sm:$0xff]
        %v242 = vld [vmem:[#allocation2 + $0xe0] sm:$0xf]
        %v243 = vld [vmem:[#allocation2 + $0xe4] sm:$0xff]
        %v244 = vld [vmem:[#allocation2 + $0xec] sm:$0xf]
        %v245 = vld [vmem:[#allocation2 + $0xf0] sm:$0xff]
        %v246 = vld [vmem:[#allocation2 + $0xf8] sm:$0xf]
        %v247 = vld [vmem:[#allocation2 + $0xfc] sm:$0xff]
        %v248 = vld [vmem:[#allocation2 + $0x104] sm:$0xf]
        %v249 = vld [vmem:[#allocation2 + $0x108] sm:$0xff]
        %v250 = vld [vmem:[#allocation2 + $0x110] sm:$0xf]
        %v251 = vld [vmem:[#allocation2 + $0x114] sm:$0xff]
        %v252 = vld [vmem:[#allocation2 + $0x11c] sm:$0xf]
        %v253 = vld [vmem:[#allocation2 + $0x120] sm:$0xff]
        %v254 = vld [vmem:[#allocation2 + $0x128] sm:$0xf]
        %v255 = vld [vmem:[#allocation2 + $0x12c] sm:$0xff]
        %v256 = vld [vmem:[#allocation2 + $0x134] sm:$0xf]
        %v257 = vld [vmem:[#allocation2 + $0x138] sm:$0xff]
        %v258 = vld [vmem:[#allocation2 + $0x140] sm:$0xf]
        %v259 = vld [vmem:[#allocation2 + $0x144] sm:$0xff]
        %v260 = vld [vmem:[#allocation2 + $0x14c] sm:$0xf]
        %v261 = vld [vmem:[#allocation2 + $0x150] sm:$0xff]
        %v262 = vld [vmem:[#allocation2 + $0x158] sm:$0xf]
        %v263 = vld [vmem:[#allocation2 + $0x15c] sm:$0xff]
        %v264 = vld [vmem:[#allocation2 + $0x164] sm:$0xf]
        %v265 = vld [vmem:[#allocation2 + $0x168] sm:$0xff]
        %v266 = vld [vmem:[#allocation2 + $0x170] sm:$0xf]
        %v267 = vld [vmem:[#allocation2 + $0x174] sm:$0xff]
        %v268 = vld [vmem:[#allocation2 + $0x17c] sm:$0xf]
        %v269 = vld [vmem:[%s179] sm:$0xff]
        %v270 = vld [vmem:[%s179 + $0x8] sm:$0xf]
        %v271 = vld [vmem:[%s179 + $0xc] sm:$0xff]
        %v272 = vld [vmem:[%s179 + $0x14] sm:$0xf]
        %v273 = vld [vmem:[%s179 + $0x18] sm:$0xff]
        %v274 = vld [vmem:[%s179 + $0x20] sm:$0xf]
        %v275 = vld [vmem:[%s179 + $0x24] sm:$0xff]
        %v276 = vld [vmem:[%s179 + $0x2c] sm:$0xf]
        %v277 = vld [vmem:[%s179 + $0x30] sm:$0xff]
        %v278 = vld [vmem:[%s179 + $0x38] sm:$0xf]
        %v279 = vld [vmem:[%s179 + $0x3c] sm:$0xff]
        %v280 = vld [vmem:[%s179 + $0x44] sm:$0xf]
        %v281 = vld [vmem:[%s179 + $0x48] sm:$0xff]
        %v282 = vld [vmem:[%s179 + $0x50] sm:$0xf]
        %v283 = vld [vmem:[%s179 + $0x54] sm:$0xff]
        %v284 = vld [vmem:[%s179 + $0x5c] sm:$0xf]
        %v285 = vld [vmem:[%s179 + $0x60] sm:$0xff]
        %v286 = vld [vmem:[%s179 + $0x68] sm:$0xf]
        %v287 = vld [vmem:[%s179 + $0x6c] sm:$0xff]
        %v288 = vld [vmem:[%s179 + $0x74] sm:$0xf]
        %v289 = vld [vmem:[%s179 + $0x78] sm:$0xff]
        %v290 = vld [vmem:[%s179 + $0x80] sm:$0xf]
        %v291 = vld [vmem:[%s179 + $0x84] sm:$0xff]
        %v292 = vld [vmem:[%s179 + $0x8c] sm:$0xf]
        %v293 = vld [vmem:[%s179 + $0x90] sm:$0xff]
        %v294 = vld [vmem:[%s179 + $0x98] sm:$0xf]
        %v295 = vld [vmem:[%s179 + $0x9c] sm:$0xff]
        %v296 = vld [vmem:[%s179 + $0xa4] sm:$0xf]
        %v297 = vld [vmem:[%s179 + $0xa8] sm:$0xff]
        %v298 = vld [vmem:[%s179 + $0xb0] sm:$0xf]
        %v299 = vld [vmem:[%s179 + $0xb4] sm:$0xff]
        %v300 = vld [vmem:[%s179 + $0xbc] sm:$0xf]
        %v301 = vld [vmem:[%s179 + $0xc0] sm:$0xff]
        %v302 = vld [vmem:[%s179 + $0xc8] sm:$0xf]
        %v303 = vld [vmem:[%s179 + $0xcc] sm:$0xff]
        %v304 = vld [vmem:[%s179 + $0xd4] sm:$0xf]
        %v305 = vld [vmem:[%s179 + $0xd8] sm:$0xff]
        %v306 = vld [vmem:[%s179 + $0xe0] sm:$0xf]
        %v307 = vld [vmem:[%s179 + $0xe4] sm:$0xff]
        %v308 = vld [vmem:[%s179 + $0xec] sm:$0xf]
        %v309 = vld [vmem:[%s179 + $0xf0] sm:$0xff]
        %v310 = vld [vmem:[%s179 + $0xf8] sm:$0xf]
        %v311 = vld [vmem:[%s179 + $0xfc] sm:$0xff]
        %v312 = vld [vmem:[%s179 + $0x104] sm:$0xf]
        %v313 = vld [vmem:[%s179 + $0x108] sm:$0xff]
        %v314 = vld [vmem:[%s179 + $0x110] sm:$0xf]
        %v315 = vld [vmem:[%s179 + $0x114] sm:$0xff]
        %v316 = vld [vmem:[%s179 + $0x11c] sm:$0xf]
        %v317 = vld [vmem:[%s179 + $0x120] sm:$0xff]
        %v318 = vld [vmem:[%s179 + $0x128] sm:$0xf]
        %v319 = vld [vmem:[%s179 + $0x12c] sm:$0xff]
        %v320 = vld [vmem:[%s179 + $0x134] sm:$0xf]
        %v321 = vld [vmem:[%s179 + $0x138] sm:$0xff]
        %v322 = vld [vmem:[%s179 + $0x140] sm:$0xf]
        %v323 = vld [vmem:[%s179 + $0x144] sm:$0xff]
        %v324 = vld [vmem:[%s179 + $0x14c] sm:$0xf]
        %v325 = vld [vmem:[%s179 + $0x150] sm:$0xff]
        %v326 = vld [vmem:[%s179 + $0x158] sm:$0xf]
        %v327 = vld [vmem:[%s179 + $0x15c] sm:$0xff]
        %v328 = vld [vmem:[%s179 + $0x164] sm:$0xf]
        %v329 = vld [vmem:[%s179 + $0x168] sm:$0xff]
        %v330 = vld [vmem:[%s179 + $0x170] sm:$0xf]
        %v331 = vld [vmem:[%s179 + $0x174] sm:$0xff]
        %v332 = vld [vmem:[%s179 + $0x17c] sm:$0xf]
        %v333 = vld [vmem:[%s179 + $0x180] sm:$0xff]
        %v334 = vld [vmem:[%s179 + $0x188] sm:$0xf]
        %v335 = vld [vmem:[%s179 + $0x18c] sm:$0xff]
        %v336 = vld [vmem:[%s179 + $0x194] sm:$0xf]
        %v337 = vld [vmem:[%s179 + $0x198] sm:$0xff]
        %v338 = vld [vmem:[%s179 + $0x1a0] sm:$0xf]
        %v339 = vld [vmem:[%s179 + $0x1a4] sm:$0xff]
        %v340 = vld [vmem:[%s179 + $0x1ac] sm:$0xf]
        %v341 = vld [vmem:[%s179 + $0x1b0] sm:$0xff]
        %v342 = vld [vmem:[%s179 + $0x1b8] sm:$0xf]
        %v343 = vld [vmem:[%s179 + $0x1bc] sm:$0xff]
        %v344 = vld [vmem:[%s179 + $0x1c4] sm:$0xf]
        %v345 = vld [vmem:[%s179 + $0x1c8] sm:$0xff]
        %v346 = vld [vmem:[%s179 + $0x1d0] sm:$0xf]
        %v347 = vld [vmem:[%s179 + $0x1d4] sm:$0xff]
        %v348 = vld [vmem:[%s179 + $0x1dc] sm:$0xf]
        %v349 = vld [vmem:[%s179 + $0x1e0] sm:$0xff]
        %v350 = vld [vmem:[%s179 + $0x1e8] sm:$0xf]
        %v351 = vld [vmem:[%s179 + $0x1ec] sm:$0xff]
        %v352 = vld [vmem:[%s179 + $0x1f4] sm:$0xf]
        %v353 = vld [vmem:[%s179 + $0x1f8] sm:$0xff]
        %v354 = vld [vmem:[%s179 + $0x200] sm:$0xf]
        %v355 = vld [vmem:[%s179 + $0x204] sm:$0xff]
        %v356 = vld [vmem:[%s179 + $0x20c] sm:$0xf]
        %v357 = vld [vmem:[%s179 + $0x210] sm:$0xff]
        %v358 = vld [vmem:[%s179 + $0x218] sm:$0xf]
        %v359 = vld [vmem:[%s179 + $0x21c] sm:$0xff]
        %v360 = vld [vmem:[%s179 + $0x224] sm:$0xf]
        %v361 = vld [vmem:[%s179 + $0x228] sm:$0xff]
        %v362 = vld [vmem:[%s179 + $0x230] sm:$0xf]
        %v363 = vld [vmem:[%s179 + $0x234] sm:$0xff]
        %v364 = vld [vmem:[%s179 + $0x23c] sm:$0xf]
        %v429 = vunpack.c.l.b16 %v205
        %v430 = vunpack.c.h.b16 %v205
        %v431 = vunpack.c.l.b16 %v206
        %v432 = vunpack.c.l.b16 %v207
        %v433 = vunpack.c.h.b16 %v207
        %v434 = vunpack.c.l.b16 %v208
        %v435 = vunpack.c.l.b16 %v209
        %v436 = vunpack.c.h.b16 %v209
        %v437 = vunpack.c.l.b16 %v210
        %v438 = vunpack.c.l.b16 %v211
        %v439 = vunpack.c.h.b16 %v211
        %v440 = vunpack.c.l.b16 %v212
        %v441 = vunpack.c.l.b16 %v213
        %v442 = vunpack.c.h.b16 %v213
        %v443 = vunpack.c.l.b16 %v214
        %v444 = vunpack.c.l.b16 %v215
        %v445 = vunpack.c.h.b16 %v215
        %v446 = vunpack.c.l.b16 %v216
        %v447 = vunpack.c.l.b16 %v217
        %v448 = vunpack.c.h.b16 %v217
        %v449 = vunpack.c.l.b16 %v218
        %v450 = vunpack.c.l.b16 %v219
        %v451 = vunpack.c.h.b16 %v219
        %v452 = vunpack.c.l.b16 %v220
        %v453 = vunpack.c.l.b16 %v221
        %v454 = vunpack.c.h.b16 %v221
        %v455 = vunpack.c.l.b16 %v222
        %v456 = vunpack.c.l.b16 %v223
        %v457 = vunpack.c.h.b16 %v223
        %v458 = vunpack.c.l.b16 %v224
        %v459 = vunpack.c.l.b16 %v225
        %v460 = vunpack.c.h.b16 %v225
        %v461 = vunpack.c.l.b16 %v226
        %v462 = vunpack.c.l.b16 %v227
        %v463 = vunpack.c.h.b16 %v227
        %v464 = vunpack.c.l.b16 %v228
        %v465 = vunpack.c.l.b16 %v229
        %v466 = vunpack.c.h.b16 %v229
        %v467 = vunpack.c.l.b16 %v230
        %v468 = vunpack.c.l.b16 %v231
        %v469 = vunpack.c.h.b16 %v231
        %v470 = vunpack.c.l.b16 %v232
        %v471 = vunpack.c.l.b16 %v233
        %v472 = vunpack.c.h.b16 %v233
        %v473 = vunpack.c.l.b16 %v234
        %v474 = vunpack.c.l.b16 %v235
        %v475 = vunpack.c.h.b16 %v235
        %v476 = vunpack.c.l.b16 %v236
        %v477 = vunpack.c.l.b16 %v237
        %v478 = vunpack.c.h.b16 %v237
        %v479 = vunpack.c.l.b16 %v238
        %v480 = vunpack.c.l.b16 %v239
        %v481 = vunpack.c.h.b16 %v239
        %v482 = vunpack.c.l.b16 %v240
        %v483 = vunpack.c.l.b16 %v241
        %v484 = vunpack.c.h.b16 %v241
        %v485 = vunpack.c.l.b16 %v242
        %v486 = vunpack.c.l.b16 %v243
        %v487 = vunpack.c.h.b16 %v243
        %v488 = vunpack.c.l.b16 %v244
        %v489 = vunpack.c.l.b16 %v245
        %v490 = vunpack.c.h.b16 %v245
        %v491 = vunpack.c.l.b16 %v246
        %v492 = vunpack.c.l.b16 %v247
        %v493 = vunpack.c.h.b16 %v247
        %v494 = vunpack.c.l.b16 %v248
        %v495 = vunpack.c.l.b16 %v249
        %v496 = vunpack.c.h.b16 %v249
        %v497 = vunpack.c.l.b16 %v250
        %v498 = vunpack.c.l.b16 %v251
        %v499 = vunpack.c.h.b16 %v251
        %v500 = vunpack.c.l.b16 %v252
        %v501 = vunpack.c.l.b16 %v253
        %v502 = vunpack.c.h.b16 %v253
        %v503 = vunpack.c.l.b16 %v254
        %v504 = vunpack.c.l.b16 %v255
        %v505 = vunpack.c.h.b16 %v255
        %v506 = vunpack.c.l.b16 %v256
        %v507 = vunpack.c.l.b16 %v257
        %v508 = vunpack.c.h.b16 %v257
        %v509 = vunpack.c.l.b16 %v258
        %v510 = vunpack.c.l.b16 %v259
        %v511 = vunpack.c.h.b16 %v259
        %v512 = vunpack.c.l.b16 %v260
        %v513 = vunpack.c.l.b16 %v261
        %v514 = vunpack.c.h.b16 %v261
        %v515 = vunpack.c.l.b16 %v262
        %v516 = vunpack.c.l.b16 %v263
        %v517 = vunpack.c.h.b16 %v263
        %v518 = vunpack.c.l.b16 %v264
        %v519 = vunpack.c.l.b16 %v265
        %v520 = vunpack.c.h.b16 %v265
        %v521 = vunpack.c.l.b16 %v266
        %v522 = vunpack.c.l.b16 %v267
        %v523 = vunpack.c.h.b16 %v267
        %v524 = vunpack.c.l.b16 %v268
        %v525 = vpack.c.b16 %v432, %v429
        %v526 = vpack.c.b16 %v433, %v430
        %v527 = vpack.c.b16 %v434, %v431
        %v528 = vpack.c.b16 %v438, %v435
        %v529 = vpack.c.b16 %v439, %v436
        %v530 = vpack.c.b16 %v440, %v437
        %v531 = vpack.c.b16 %v444, %v441
        %v532 = vpack.c.b16 %v445, %v442
        %v533 = vpack.c.b16 %v446, %v443
        %v534 = vpack.c.b16 %v450, %v447
        %v535 = vpack.c.b16 %v451, %v448
        %v536 = vpack.c.b16 %v452, %v449
        %v537 = vpack.c.b16 %v456, %v453
        %v538 = vpack.c.b16 %v457, %v454
        %v539 = vpack.c.b16 %v458, %v455
        %v540 = vpack.c.b16 %v462, %v459
        %v541 = vpack.c.b16 %v463, %v460
        %v542 = vpack.c.b16 %v464, %v461
        %v543 = vpack.c.b16 %v468, %v465
        %v544 = vpack.c.b16 %v469, %v466
        %v545 = vpack.c.b16 %v470, %v467
        %v546 = vpack.c.b16 %v474, %v471
        %v547 = vpack.c.b16 %v475, %v472
        %v548 = vpack.c.b16 %v476, %v473
        %v549 = vpack.c.b16 %v480, %v477
        %v550 = vpack.c.b16 %v481, %v478
        %v551 = vpack.c.b16 %v482, %v479
        %v552 = vpack.c.b16 %v486, %v483
        %v553 = vpack.c.b16 %v487, %v484
        %v554 = vpack.c.b16 %v488, %v485
        %v555 = vpack.c.b16 %v492, %v489
        %v556 = vpack.c.b16 %v493, %v490
        %v557 = vpack.c.b16 %v494, %v491
        %v558 = vpack.c.b16 %v498, %v495
        %v559 = vpack.c.b16 %v499, %v496
        %v560 = vpack.c.b16 %v500, %v497
        %v561 = vpack.c.b16 %v504, %v501
        %v562 = vpack.c.b16 %v505, %v502
        %v563 = vpack.c.b16 %v506, %v503
        %v564 = vpack.c.b16 %v510, %v507
        %v565 = vpack.c.b16 %v511, %v508
        %v566 = vpack.c.b16 %v512, %v509
        %v567 = vpack.c.b16 %v516, %v513
        %v568 = vpack.c.b16 %v517, %v514
        %v569 = vpack.c.b16 %v518, %v515
        %v570 = vpack.c.b16 %v522, %v519
        %v571 = vpack.c.b16 %v523, %v520
        %v572 = vpack.c.b16 %v524, %v521
        %v717 = vunpack.c.l.b16 %v269
        %v718 = vunpack.c.h.b16 %v269
        %v719 = vunpack.c.l.b16 %v270
        %v720 = vunpack.c.l.b16 %v271
        %v721 = vunpack.c.h.b16 %v271
        %v722 = vunpack.c.l.b16 %v272
        %v723 = vunpack.c.l.b16 %v273
        %v724 = vunpack.c.h.b16 %v273
        %v725 = vunpack.c.l.b16 %v274
        %v726 = vunpack.c.l.b16 %v275
        %v727 = vunpack.c.h.b16 %v275
        %v728 = vunpack.c.l.b16 %v276
        %v729 = vunpack.c.l.b16 %v277
        %v730 = vunpack.c.h.b16 %v277
        %v731 = vunpack.c.l.b16 %v278
        %v732 = vunpack.c.l.b16 %v279
        %v733 = vunpack.c.h.b16 %v279
        %v734 = vunpack.c.l.b16 %v280
        %v735 = vunpack.c.l.b16 %v281
        %v736 = vunpack.c.h.b16 %v281
        %v737 = vunpack.c.l.b16 %v282
        %v738 = vunpack.c.l.b16 %v283
        %v739 = vunpack.c.h.b16 %v283
        %v740 = vunpack.c.l.b16 %v284
        %v741 = vunpack.c.l.b16 %v285
        %v742 = vunpack.c.h.b16 %v285
        %v743 = vunpack.c.l.b16 %v286
        %v744 = vunpack.c.l.b16 %v287
        %v745 = vunpack.c.h.b16 %v287
        %v746 = vunpack.c.l.b16 %v288
        %v747 = vunpack.c.l.b16 %v289
        %v748 = vunpack.c.h.b16 %v289
        %v749 = vunpack.c.l.b16 %v290
        %v750 = vunpack.c.l.b16 %v291
        %v751 = vunpack.c.h.b16 %v291
        %v752 = vunpack.c.l.b16 %v292
        %v753 = vunpack.c.l.b16 %v293
        %v754 = vunpack.c.h.b16 %v293
        %v755 = vunpack.c.l.b16 %v294
        %v756 = vunpack.c.l.b16 %v295
        %v757 = vunpack.c.h.b16 %v295
        %v758 = vunpack.c.l.b16 %v296
        %v759 = vunpack.c.l.b16 %v297
        %v760 = vunpack.c.h.b16 %v297
        %v761 = vunpack.c.l.b16 %v298
        %v762 = vunpack.c.l.b16 %v299
        %v763 = vunpack.c.h.b16 %v299
        %v764 = vunpack.c.l.b16 %v300
        %v765 = vunpack.c.l.b16 %v301
        %v766 = vunpack.c.h.b16 %v301
        %v767 = vunpack.c.l.b16 %v302
        %v768 = vunpack.c.l.b16 %v303
        %v769 = vunpack.c.h.b16 %v303
        %v770 = vunpack.c.l.b16 %v304
        %v771 = vunpack.c.l.b16 %v305
        %v772 = vunpack.c.h.b16 %v305
        %v773 = vunpack.c.l.b16 %v306
        %v774 = vunpack.c.l.b16 %v307
        %v775 = vunpack.c.h.b16 %v307
        %v776 = vunpack.c.l.b16 %v308
        %v777 = vunpack.c.l.b16 %v309
        %v778 = vunpack.c.h.b16 %v309
        %v779 = vunpack.c.l.b16 %v310
        %v780 = vunpack.c.l.b16 %v311
        %v781 = vunpack.c.h.b16 %v311
        %v782 = vunpack.c.l.b16 %v312
        %v783 = vunpack.c.l.b16 %v313
        %v784 = vunpack.c.h.b16 %v313
        %v785 = vunpack.c.l.b16 %v314
        %v786 = vunpack.c.l.b16 %v315
        %v787 = vunpack.c.h.b16 %v315
        %v788 = vunpack.c.l.b16 %v316
        %v789 = vunpack.c.l.b16 %v317
        %v790 = vunpack.c.h.b16 %v317
        %v791 = vunpack.c.l.b16 %v318
        %v792 = vunpack.c.l.b16 %v319
        %v793 = vunpack.c.h.b16 %v319
        %v794 = vunpack.c.l.b16 %v320
        %v795 = vunpack.c.l.b16 %v321
        %v796 = vunpack.c.h.b16 %v321
        %v797 = vunpack.c.l.b16 %v322
        %v798 = vunpack.c.l.b16 %v323
        %v799 = vunpack.c.h.b16 %v323
        %v800 = vunpack.c.l.b16 %v324
        %v801 = vunpack.c.l.b16 %v325
        %v802 = vunpack.c.h.b16 %v325
        %v803 = vunpack.c.l.b16 %v326
        %v804 = vunpack.c.l.b16 %v327
        %v805 = vunpack.c.h.b16 %v327
        %v806 = vunpack.c.l.b16 %v328
        %v807 = vunpack.c.l.b16 %v329
        %v808 = vunpack.c.h.b16 %v329
        %v809 = vunpack.c.l.b16 %v330
        %v810 = vunpack.c.l.b16 %v331
        %v811 = vunpack.c.h.b16 %v331
        %v812 = vunpack.c.l.b16 %v332
        %v813 = vunpack.c.l.b16 %v333
        %v814 = vunpack.c.h.b16 %v333
        %v815 = vunpack.c.l.b16 %v334
        %v816 = vunpack.c.l.b16 %v335
        %v817 = vunpack.c.h.b16 %v335
        %v818 = vunpack.c.l.b16 %v336
        %v819 = vunpack.c.l.b16 %v337
        %v820 = vunpack.c.h.b16 %v337
        %v821 = vunpack.c.l.b16 %v338
        %v822 = vunpack.c.l.b16 %v339
        %v823 = vunpack.c.h.b16 %v339
        %v824 = vunpack.c.l.b16 %v340
        %v825 = vunpack.c.l.b16 %v341
        %v826 = vunpack.c.h.b16 %v341
        %v827 = vunpack.c.l.b16 %v342
        %v828 = vunpack.c.l.b16 %v343
        %v829 = vunpack.c.h.b16 %v343
        %v830 = vunpack.c.l.b16 %v344
        %v831 = vunpack.c.l.b16 %v345
        %v832 = vunpack.c.h.b16 %v345
        %v833 = vunpack.c.l.b16 %v346
        %v834 = vunpack.c.l.b16 %v347
        %v835 = vunpack.c.h.b16 %v347
        %v836 = vunpack.c.l.b16 %v348
        %v837 = vunpack.c.l.b16 %v349
        %v838 = vunpack.c.h.b16 %v349
        %v839 = vunpack.c.l.b16 %v350
        %v840 = vunpack.c.l.b16 %v351
        %v841 = vunpack.c.h.b16 %v351
        %v842 = vunpack.c.l.b16 %v352
        %v843 = vunpack.c.l.b16 %v353
        %v844 = vunpack.c.h.b16 %v353
        %v845 = vunpack.c.l.b16 %v354
        %v846 = vunpack.c.l.b16 %v355
        %v847 = vunpack.c.h.b16 %v355
        %v848 = vunpack.c.l.b16 %v356
        %v849 = vunpack.c.l.b16 %v357
        %v850 = vunpack.c.h.b16 %v357
        %v851 = vunpack.c.l.b16 %v358
        %v852 = vunpack.c.l.b16 %v359
        %v853 = vunpack.c.h.b16 %v359
        %v854 = vunpack.c.l.b16 %v360
        %v855 = vunpack.c.l.b16 %v361
        %v856 = vunpack.c.h.b16 %v361
        %v857 = vunpack.c.l.b16 %v362
        %v858 = vunpack.c.l.b16 %v363
        %v859 = vunpack.c.h.b16 %v363
        %v860 = vunpack.c.l.b16 %v364
        %v861 = vpack.c.b16 %v720, %v717
        %v862 = vpack.c.b16 %v721, %v718
        %v863 = vpack.c.b16 %v722, %v719
        %v864 = vpack.c.b16 %v726, %v723
        %v865 = vpack.c.b16 %v727, %v724
        %v866 = vpack.c.b16 %v728, %v725
        %v867 = vpack.c.b16 %v732, %v729
        %v868 = vpack.c.b16 %v733, %v730
        %v869 = vpack.c.b16 %v734, %v731
        %v870 = vpack.c.b16 %v738, %v735
        %v871 = vpack.c.b16 %v739, %v736
        %v872 = vpack.c.b16 %v740, %v737
        %v873 = vpack.c.b16 %v744, %v741
        %v874 = vpack.c.b16 %v745, %v742
        %v875 = vpack.c.b16 %v746, %v743
        %v876 = vpack.c.b16 %v750, %v747
        %v877 = vpack.c.b16 %v751, %v748
        %v878 = vpack.c.b16 %v752, %v749
        %v879 = vpack.c.b16 %v756, %v753
        %v880 = vpack.c.b16 %v757, %v754
        %v881 = vpack.c.b16 %v758, %v755
        %v882 = vpack.c.b16 %v762, %v759
        %v883 = vpack.c.b16 %v763, %v760
        %v884 = vpack.c.b16 %v764, %v761
        %v885 = vpack.c.b16 %v768, %v765
        %v886 = vpack.c.b16 %v769, %v766
        %v887 = vpack.c.b16 %v770, %v767
        %v888 = vpack.c.b16 %v774, %v771
        %v889 = vpack.c.b16 %v775, %v772
        %v890 = vpack.c.b16 %v776, %v773
        %v891 = vpack.c.b16 %v780, %v777
        %v892 = vpack.c.b16 %v781, %v778
        %v893 = vpack.c.b16 %v782, %v779
        %v894 = vpack.c.b16 %v786, %v783
        %v895 = vpack.c.b16 %v787, %v784
        %v896 = vpack.c.b16 %v788, %v785
        %v897 = vpack.c.b16 %v792, %v789
        %v898 = vpack.c.b16 %v793, %v790
        %v899 = vpack.c.b16 %v794, %v791
        %v900 = vpack.c.b16 %v798, %v795
        %v901 = vpack.c.b16 %v799, %v796
        %v902 = vpack.c.b16 %v800, %v797
        %v903 = vpack.c.b16 %v804, %v801
        %v904 = vpack.c.b16 %v805, %v802
        %v905 = vpack.c.b16 %v806, %v803
        %v906 = vpack.c.b16 %v810, %v807
        %v907 = vpack.c.b16 %v811, %v808
        %v908 = vpack.c.b16 %v812, %v809
        %v909 = vpack.c.b16 %v816, %v813
        %v910 = vpack.c.b16 %v817, %v814
        %v911 = vpack.c.b16 %v818, %v815
        %v912 = vpack.c.b16 %v822, %v819
        %v913 = vpack.c.b16 %v823, %v820
        %v914 = vpack.c.b16 %v824, %v821
        %v915 = vpack.c.b16 %v828, %v825
        %v916 = vpack.c.b16 %v829, %v826
        %v917 = vpack.c.b16 %v830, %v827
        %v918 = vpack.c.b16 %v834, %v831
        %v919 = vpack.c.b16 %v835, %v832
        %v920 = vpack.c.b16 %v836, %v833
        %v921 = vpack.c.b16 %v840, %v837
        %v922 = vpack.c.b16 %v841, %v838
        %v923 = vpack.c.b16 %v842, %v839
        %v924 = vpack.c.b16 %v846, %v843
        %v925 = vpack.c.b16 %v847, %v844
        %v926 = vpack.c.b16 %v848, %v845
        %v927 = vpack.c.b16 %v852, %v849
        %v928 = vpack.c.b16 %v853, %v850
        %v929 = vpack.c.b16 %v854, %v851
        %v930 = vpack.c.b16 %v858, %v855
        %v931 = vpack.c.b16 %v859, %v856
        %v932 = vpack.c.b16 %v860, %v857
        %1005 = vmatprep.subr.bf16.mxu0 %v862
        %1006 = vmatpush1.bf16.msra.mxu0 %v861
        %1007 = vmatprep.subr.bf16.mxu0 %v865
        %1008 = vmatpush1.bf16.msra.mxu0 %v864
        %1009 = vmatprep.subr.bf16.mxu0 %v868
        %1010 = vmatpush1.bf16.msra.mxu0 %v867
        %1011 = vmatprep.subr.bf16.mxu0 %v871
        %1012 = vmatpush1.bf16.msra.mxu0 %v870
        %1013 = vmatprep.subr.bf16.mxu0 %v874
        %1014 = vmatpush1.bf16.msra.mxu0 %v873
        %1015 = vmatprep.subr.bf16.mxu0 %v877
        %1016 = vmatpush1.bf16.msra.mxu0 %v876
        %1017 = vmatprep.subr.bf16.mxu0 %v880
        %1018 = vmatpush1.bf16.msra.mxu0 %v879
        %1019 = vmatprep.subr.bf16.mxu0 %v883
        %1020 = vmatpush1.bf16.msra.mxu0 %v882
        %1021 = vmatprep.subr.bf16.mxu0 %v886
        %1022 = vmatpush1.bf16.msra.mxu0 %v885
        %1023 = vmatprep.subr.bf16.mxu0 %v889
        %1024 = vmatpush1.bf16.msra.mxu0 %v888
        %1025 = vmatprep.subr.bf16.mxu0 %v892
        %1026 = vmatpush1.bf16.msra.mxu0 %v891
        %1027 = vmatprep.subr.bf16.mxu0 %v895
        %1028 = vmatpush1.bf16.msra.mxu0 %v894
        %1029 = vmatprep.subr.bf16.mxu0 %v898
        %1030 = vmatpush1.bf16.msra.mxu0 %v897
        %1031 = vmatprep.subr.bf16.mxu0 %v901
        %1032 = vmatpush1.bf16.msra.mxu0 %v900
        %1033 = vmatprep.subr.bf16.mxu0 %v904
        %1034 = vmatpush1.bf16.msra.mxu0 %v903
        %1035 = vmatprep.subr.bf16.mxu0 %v907
        %1036 = vmatpush1.bf16.msra.mxu0 %v906
        %1037 = vmatprep.mubr.bf16.mxu0 %v526
        %1038 = vmatmul.mubr.bf16.gmra.mrb[0].mxu0 %v525
        %v1039 = vpop.f32.mrb[0].mxu0
        %v1040 = vadd.f32 0.0, %v1039
        %v1041 = vpop.f32.mrb[0].mxu0
        %v1042 = vadd.f32 0.0, %v1041
        %v1043 = vpop.f32.mrb[0].mxu0
        %v1044 = vadd.f32 0.0, %v1043
        %v1045 = vpop.f32.mrb[0].mxu0
        %v1046 = vadd.f32 0.0, %v1045
        %1047 = vmatprep.mubr.bf16.mxu0 %v529
        %1048 = vmatmul.mubr.bf16.gmra.mrb[0].mxu0 %v528
        %v1049 = vpop.f32.mrb[0].mxu0
        %v1050 = vadd.f32 0.0, %v1049
        %v1051 = vpop.f32.mrb[0].mxu0
        %v1052 = vadd.f32 0.0, %v1051
        %v1053 = vpop.f32.mrb[0].mxu0
        %v1054 = vadd.f32 0.0, %v1053
        %v1055 = vpop.f32.mrb[0].mxu0
        %v1056 = vadd.f32 0.0, %v1055
        %1057 = vmatprep.mubr.bf16.mxu0 %v532
        %1058 = vmatmul.mubr.bf16.gmra.mrb[0].mxu0 %v531
        %v1059 = vpop.f32.mrb[0].mxu0
        %v1060 = vadd.f32 0.0, %v1059
        %v1061 = vpop.f32.mrb[0].mxu0
        %v1062 = vadd.f32 0.0, %v1061
        %v1063 = vpop.f32.mrb[0].mxu0
        %v1064 = vadd.f32 0.0, %v1063
        %v1065 = vpop.f32.mrb[0].mxu0
        %v1066 = vadd.f32 0.0, %v1065
        %1067 = vmatprep.mubr.bf16.mxu0 %v535
        %1068 = vmatmul.mubr.bf16.gmra.mrb[0].mxu0 %v534
        %v1069 = vpop.f32.mrb[0].mxu0
        %v1070 = vadd.f32 0.0, %v1069
        %v1071 = vpop.f32.mrb[0].mxu0
        %v1072 = vadd.f32 0.0, %v1071
        %v1073 = vpop.f32.mrb[0].mxu0
        %v1074 = vadd.f32 0.0, %v1073
        %v1075 = vpop.f32.mrb[0].mxu0
        %v1076 = vadd.f32 0.0, %v1075
        %1077 = vmatprep.mubr.bf16.mxu0 %v538
        %1078 = vmatmul.mubr.bf16.gmra.mrb[0].mxu0 %v537
        %v1079 = vpop.f32.mrb[0].mxu0
        %v1080 = vadd.f32 0.0, %v1079
        %v1081 = vpop.f32.mrb[0].mxu0
        %v1082 = vadd.f32 0.0, %v1081
        %v1083 = vpop.f32.mrb[0].mxu0
        %v1084 = vadd.f32 0.0, %v1083
        %v1085 = vpop.f32.mrb[0].mxu0
        %v1086 = vadd.f32 0.0, %v1085
        %1087 = vmatprep.mubr.bf16.mxu0 %v541
        %1088 = vmatmul.mubr.bf16.gmra.mrb[0].mxu0 %v540
        %v1089 = vpop.f32.mrb[0].mxu0
        %v1090 = vadd.f32 0.0, %v1089
        %v1091 = vpop.f32.mrb[0].mxu0
        %v1092 = vadd.f32 0.0, %v1091
        %v1093 = vpop.f32.mrb[0].mxu0
        %v1094 = vadd.f32 0.0, %v1093
        %v1095 = vpop.f32.mrb[0].mxu0
        %v1096 = vadd.f32 0.0, %v1095
        %1097 = vmatprep.mubr.bf16.mxu0 %v544
        %1098 = vmatmul.mubr.bf16.gmra.mrb[0].mxu0 %v543
        %v1099 = vpop.f32.mrb[0].mxu0
        %v1100 = vadd.f32 0.0, %v1099
        %v1101 = vpop.f32.mrb[0].mxu0
        %v1102 = vadd.f32 0.0, %v1101
        %v1103 = vpop.f32.mrb[0].mxu0
        %v1104 = vadd.f32 0.0, %v1103
        %v1105 = vpop.f32.mrb[0].mxu0
        %v1106 = vadd.f32 0.0, %v1105
        %1107 = vmatprep.mubr.bf16.mxu0 %v547
        %1108 = vmatmul.mubr.bf16.gmra.mrb[0].mxu0 %v546
        %v1109 = vpop.f32.mrb[0].mxu0
        %v1110 = vadd.f32 0.0, %v1109
        %v1111 = vpop.f32.mrb[0].mxu0
        %v1112 = vadd.f32 0.0, %v1111
        %v1113 = vpop.f32.mrb[0].mxu0
        %v1114 = vadd.f32 0.0, %v1113
        %v1115 = vpop.f32.mrb[0].mxu0
        %v1116 = vadd.f32 0.0, %v1115
        %1117 = vmatprep.mubr.bf16.mxu0 %v550
        %1118 = vmatmul.mubr.bf16.gmra.mrb[0].mxu0 %v549
        %v1119 = vpop.f32.mrb[0].mxu0
        %v1120 = vadd.f32 0.0, %v1119
        %v1121 = vpop.f32.mrb[0].mxu0
        %v1122 = vadd.f32 0.0, %v1121
        %v1123 = vpop.f32.mrb[0].mxu0
        %v1124 = vadd.f32 0.0, %v1123
        %v1125 = vpop.f32.mrb[0].mxu0
        %v1126 = vadd.f32 0.0, %v1125
        %1127 = vmatprep.mubr.bf16.mxu0 %v553
        %1128 = vmatmul.mubr.bf16.gmra.mrb[0].mxu0 %v552
        %v1129 = vpop.f32.mrb[0].mxu0
        %v1130 = vadd.f32 0.0, %v1129
        %v1131 = vpop.f32.mrb[0].mxu0
        %v1132 = vadd.f32 0.0, %v1131
        %v1133 = vpop.f32.mrb[0].mxu0
        %v1134 = vadd.f32 0.0, %v1133
        %v1135 = vpop.f32.mrb[0].mxu0
        %v1136 = vadd.f32 0.0, %v1135
        %1137 = vmatprep.mubr.bf16.mxu0 %v556
        %1138 = vmatmul.mubr.bf16.gmra.mrb[0].mxu0 %v555
        %v1139 = vpop.f32.mrb[0].mxu0
        %v1140 = vadd.f32 0.0, %v1139
        %v1141 = vpop.f32.mrb[0].mxu0
        %v1142 = vadd.f32 0.0, %v1141
        %v1143 = vpop.f32.mrb[0].mxu0
        %v1144 = vadd.f32 0.0, %v1143
        %v1145 = vpop.f32.mrb[0].mxu0
        %v1146 = vadd.f32 0.0, %v1145
        %1147 = vmatprep.mubr.bf16.mxu0 %v559
        %1148 = vmatmul.mubr.bf16.gmra.mrb[0].mxu0 %v558
        %v1149 = vpop.f32.mrb[0].mxu0
        %v1150 = vadd.f32 0.0, %v1149
        %v1151 = vpop.f32.mrb[0].mxu0
        %v1152 = vadd.f32 0.0, %v1151
        %v1153 = vpop.f32.mrb[0].mxu0
        %v1154 = vadd.f32 0.0, %v1153
        %v1155 = vpop.f32.mrb[0].mxu0
        %v1156 = vadd.f32 0.0, %v1155
        %1157 = vmatprep.mubr.bf16.mxu0 %v562
        %1158 = vmatmul.mubr.bf16.gmra.mrb[0].mxu0 %v561
        %v1159 = vpop.f32.mrb[0].mxu0
        %v1160 = vadd.f32 0.0, %v1159
        %v1161 = vpop.f32.mrb[0].mxu0
        %v1162 = vadd.f32 0.0, %v1161
        %v1163 = vpop.f32.mrb[0].mxu0
        %v1164 = vadd.f32 0.0, %v1163
        %v1165 = vpop.f32.mrb[0].mxu0
        %v1166 = vadd.f32 0.0, %v1165
        %1167 = vmatprep.mubr.bf16.mxu0 %v565
        %1168 = vmatmul.mubr.bf16.gmra.mrb[0].mxu0 %v564
        %v1169 = vpop.f32.mrb[0].mxu0
        %v1170 = vadd.f32 0.0, %v1169
        %v1171 = vpop.f32.mrb[0].mxu0
        %v1172 = vadd.f32 0.0, %v1171
        %v1173 = vpop.f32.mrb[0].mxu0
        %v1174 = vadd.f32 0.0, %v1173
        %v1175 = vpop.f32.mrb[0].mxu0
        %v1176 = vadd.f32 0.0, %v1175
        %1177 = vmatprep.mubr.bf16.mxu0 %v568
        %1178 = vmatmul.mubr.bf16.gmra.mrb[0].mxu0 %v567
        %v1179 = vpop.f32.mrb[0].mxu0
        %v1180 = vadd.f32 0.0, %v1179
        %v1181 = vpop.f32.mrb[0].mxu0
        %v1182 = vadd.f32 0.0, %v1181
        %v1183 = vpop.f32.mrb[0].mxu0
        %v1184 = vadd.f32 0.0, %v1183
        %v1185 = vpop.f32.mrb[0].mxu0
        %v1186 = vadd.f32 0.0, %v1185
        %1187 = vmatprep.mubr.bf16.mxu0 %v571
        %1188 = vmatmul.mubr.bf16.gmra.mrb[0].mxu0 %v570
        %v1189 = vpop.f32.mrb[0].mxu0
        %v1190 = vadd.f32 0.0, %v1189
        %v1191 = vpop.f32.mrb[0].mxu0
        %v1192 = vadd.f32 0.0, %v1191
        %v1193 = vpop.f32.mrb[0].mxu0
        %v1194 = vadd.f32 0.0, %v1193
        %v1195 = vpop.f32.mrb[0].mxu0
        %v1196 = vadd.f32 0.0, %v1195
        %1197 = vdwg.mxu0
        %1198 = vmatprep.subr.bf16.mxu0 %v910
        %1199 = vmatpush1.bf16.msra.mxu0 %v909
        %1200 = vmatprep.subr.bf16.mxu0 %v913
        %1201 = vmatpush1.bf16.msra.mxu0 %v912
        %1202 = vmatprep.subr.bf16.mxu0 %v916
        %1203 = vmatpush1.bf16.msra.mxu0 %v915
        %1204 = vmatprep.subr.bf16.mxu0 %v919
        %1205 = vmatpush1.bf16.msra.mxu0 %v918
        %1206 = vmatprep.subr.bf16.mxu0 %v922
        %1207 = vmatpush1.bf16.msra.mxu0 %v921
        %1208 = vmatprep.subr.bf16.mxu0 %v925
        %1209 = vmatpush1.bf16.msra.mxu0 %v924
        %1210 = vmatprep.subr.bf16.mxu0 %v928
        %1211 = vmatpush1.bf16.msra.mxu0 %v927
        %1212 = vmatprep.subr.bf16.mxu0 %v931
        %1213 = vmatpush1.bf16.msra.mxu0 %v930
        %1214 = vmatprep.subr.bf16.mxu0 0
        %1215 = vmatpush1.bf16.msra.mxu0 0
        %1216 = vmatprep.subr.bf16.mxu0 0
        %1217 = vmatpush1.bf16.msra.mxu0 0
        %1218 = vmatprep.subr.bf16.mxu0 0
        %1219 = vmatpush1.bf16.msra.mxu0 0
        %1220 = vmatprep.subr.bf16.mxu0 0
        %1221 = vmatpush1.bf16.msra.mxu0 0
        %1222 = vmatprep.subr.bf16.mxu0 0
        %1223 = vmatpush1.bf16.msra.mxu0 0
        %1224 = vmatprep.subr.bf16.mxu0 0
        %1225 = vmatpush1.bf16.msra.mxu0 0
        %1226 = vmatprep.subr.bf16.mxu0 0
        %1227 = vmatpush1.bf16.msra.mxu0 0
        %1228 = vmatprep.subr.bf16.mxu0 0
        %1229 = vmatpush1.bf16.msra.mxu0 0
        %1230 = vmatprep.mubr.bf16.mxu0 0
        %1231 = vmatmul.mubr.bf16.gmra.mrb[0].mxu0 %v527
        %v1232 = vpop.f32.mrb[0].mxu0
        %v1233 = vadd.f32 %v1040, %v1232
        %v1234 = vpop.f32.mrb[0].mxu0
        %v1235 = vadd.f32 %v1042, %v1234
        %v1236 = vpop.f32.mrb[0].mxu0
        %v1237 = vadd.f32 %v1044, %v1236
        %v1238 = vpop.f32.mrb[0].mxu0
        %v1239 = vadd.f32 %v1046, %v1238
        %1240 = vmatprep.mubr.bf16.mxu0 0
        %1241 = vmatmul.mubr.bf16.gmra.mrb[0].mxu0 %v530
        %v1242 = vpop.f32.mrb[0].mxu0
        %v1243 = vadd.f32 %v1050, %v1242
        %v1244 = vpop.f32.mrb[0].mxu0
        %v1245 = vadd.f32 %v1052, %v1244
        %v1246 = vpop.f32.mrb[0].mxu0
        %v1247 = vadd.f32 %v1054, %v1246
        %v1248 = vpop.f32.mrb[0].mxu0
        %v1249 = vadd.f32 %v1056, %v1248
        %1250 = vmatprep.mubr.bf16.mxu0 0
        %1251 = vmatmul.mubr.bf16.gmra.mrb[0].mxu0 %v533
        %v1252 = vpop.f32.mrb[0].mxu0
        %v1253 = vadd.f32 %v1060, %v1252
        %v1254 = vpop.f32.mrb[0].mxu0
        %v1255 = vadd.f32 %v1062, %v1254
        %v1256 = vpop.f32.mrb[0].mxu0
        %v1257 = vadd.f32 %v1064, %v1256
        %v1258 = vpop.f32.mrb[0].mxu0
        %v1259 = vadd.f32 %v1066, %v1258
        %1260 = vmatprep.mubr.bf16.mxu0 0
        %1261 = vmatmul.mubr.bf16.gmra.mrb[0].mxu0 %v536
        %v1262 = vpop.f32.mrb[0].mxu0
        %v1263 = vadd.f32 %v1070, %v1262
        %v1264 = vpop.f32.mrb[0].mxu0
        %v1265 = vadd.f32 %v1072, %v1264
        %v1266 = vpop.f32.mrb[0].mxu0
        %v1267 = vadd.f32 %v1074, %v1266
        %v1268 = vpop.f32.mrb[0].mxu0
        %v1269 = vadd.f32 %v1076, %v1268
        %1270 = vmatprep.mubr.bf16.mxu0 0
        %1271 = vmatmul.mubr.bf16.gmra.mrb[0].mxu0 %v539
        %v1272 = vpop.f32.mrb[0].mxu0
        %v1273 = vadd.f32 %v1080, %v1272
        %v1274 = vpop.f32.mrb[0].mxu0
        %v1275 = vadd.f32 %v1082, %v1274
        %v1276 = vpop.f32.mrb[0].mxu0
        %v1277 = vadd.f32 %v1084, %v1276
        %v1278 = vpop.f32.mrb[0].mxu0
        %v1279 = vadd.f32 %v1086, %v1278
        %1280 = vmatprep.mubr.bf16.mxu0 0
        %1281 = vmatmul.mubr.bf16.gmra.mrb[0].mxu0 %v542
        %v1282 = vpop.f32.mrb[0].mxu0
        %v1283 = vadd.f32 %v1090, %v1282
        %v1284 = vpop.f32.mrb[0].mxu0
        %v1285 = vadd.f32 %v1092, %v1284
        %v1286 = vpop.f32.mrb[0].mxu0
        %v1287 = vadd.f32 %v1094, %v1286
        %v1288 = vpop.f32.mrb[0].mxu0
        %v1289 = vadd.f32 %v1096, %v1288
        %1290 = vmatprep.mubr.bf16.mxu0 0
        %1291 = vmatmul.mubr.bf16.gmra.mrb[0].mxu0 %v545
        %v1292 = vpop.f32.mrb[0].mxu0
        %v1293 = vadd.f32 %v1100, %v1292
        %v1294 = vpop.f32.mrb[0].mxu0
        %v1295 = vadd.f32 %v1102, %v1294
        %v1296 = vpop.f32.mrb[0].mxu0
        %v1297 = vadd.f32 %v1104, %v1296
        %v1298 = vpop.f32.mrb[0].mxu0
        %v1299 = vadd.f32 %v1106, %v1298
        %1300 = vmatprep.mubr.bf16.mxu0 0
        %1301 = vmatmul.mubr.bf16.gmra.mrb[0].mxu0 %v548
        %v1302 = vpop.f32.mrb[0].mxu0
        %v1303 = vadd.f32 %v1110, %v1302
        %v1304 = vpop.f32.mrb[0].mxu0
        %v1305 = vadd.f32 %v1112, %v1304
        %v1306 = vpop.f32.mrb[0].mxu0
        %v1307 = vadd.f32 %v1114, %v1306
        %v1308 = vpop.f32.mrb[0].mxu0
        %v1309 = vadd.f32 %v1116, %v1308
        %1310 = vmatprep.mubr.bf16.mxu0 0
        %1311 = vmatmul.mubr.bf16.gmra.mrb[0].mxu0 %v551
        %v1312 = vpop.f32.mrb[0].mxu0
        %v1313 = vadd.f32 %v1120, %v1312
        %v1314 = vpop.f32.mrb[0].mxu0
        %v1315 = vadd.f32 %v1122, %v1314
        %v1316 = vpop.f32.mrb[0].mxu0
        %v1317 = vadd.f32 %v1124, %v1316
        %v1318 = vpop.f32.mrb[0].mxu0
        %v1319 = vadd.f32 %v1126, %v1318
        %1320 = vmatprep.mubr.bf16.mxu0 0
        %1321 = vmatmul.mubr.bf16.gmra.mrb[0].mxu0 %v554
        %v1322 = vpop.f32.mrb[0].mxu0
        %v1323 = vadd.f32 %v1130, %v1322
        %v1324 = vpop.f32.mrb[0].mxu0
        %v1325 = vadd.f32 %v1132, %v1324
        %v1326 = vpop.f32.mrb[0].mxu0
        %v1327 = vadd.f32 %v1134, %v1326
        %v1328 = vpop.f32.mrb[0].mxu0
        %v1329 = vadd.f32 %v1136, %v1328
        %1330 = vmatprep.mubr.bf16.mxu0 0
        %1331 = vmatmul.mubr.bf16.gmra.mrb[0].mxu0 %v557
        %v1332 = vpop.f32.mrb[0].mxu0
        %v1333 = vadd.f32 %v1140, %v1332
        %v1334 = vpop.f32.mrb[0].mxu0
        %v1335 = vadd.f32 %v1142, %v1334
        %v1336 = vpop.f32.mrb[0].mxu0
        %v1337 = vadd.f32 %v1144, %v1336
        %v1338 = vpop.f32.mrb[0].mxu0
        %v1339 = vadd.f32 %v1146, %v1338
        %1340 = vmatprep.mubr.bf16.mxu0 0
        %1341 = vmatmul.mubr.bf16.gmra.mrb[0].mxu0 %v560
        %v1342 = vpop.f32.mrb[0].mxu0
        %v1343 = vadd.f32 %v1150, %v1342
        %v1344 = vpop.f32.mrb[0].mxu0
        %v1345 = vadd.f32 %v1152, %v1344
        %v1346 = vpop.f32.mrb[0].mxu0
        %v1347 = vadd.f32 %v1154, %v1346
        %v1348 = vpop.f32.mrb[0].mxu0
        %v1349 = vadd.f32 %v1156, %v1348
        %1350 = vmatprep.mubr.bf16.mxu0 0
        %1351 = vmatmul.mubr.bf16.gmra.mrb[0].mxu0 %v563
        %v1352 = vpop.f32.mrb[0].mxu0
        %v1353 = vadd.f32 %v1160, %v1352
        %v1354 = vpop.f32.mrb[0].mxu0
        %v1355 = vadd.f32 %v1162, %v1354
        %v1356 = vpop.f32.mrb[0].mxu0
        %v1357 = vadd.f32 %v1164, %v1356
        %v1358 = vpop.f32.mrb[0].mxu0
        %v1359 = vadd.f32 %v1166, %v1358
        %1360 = vmatprep.mubr.bf16.mxu0 0
        %1361 = vmatmul.mubr.bf16.gmra.mrb[0].mxu0 %v566
        %v1362 = vpop.f32.mrb[0].mxu0
        %v1363 = vadd.f32 %v1170, %v1362
        %v1364 = vpop.f32.mrb[0].mxu0
        %v1365 = vadd.f32 %v1172, %v1364
        %v1366 = vpop.f32.mrb[0].mxu0
        %v1367 = vadd.f32 %v1174, %v1366
        %v1368 = vpop.f32.mrb[0].mxu0
        %v1369 = vadd.f32 %v1176, %v1368
        %1370 = vmatprep.mubr.bf16.mxu0 0
        %1371 = vmatmul.mubr.bf16.gmra.mrb[0].mxu0 %v569
        %v1372 = vpop.f32.mrb[0].mxu0
        %v1373 = vadd.f32 %v1180, %v1372
        %v1374 = vpop.f32.mrb[0].mxu0
        %v1375 = vadd.f32 %v1182, %v1374
        %v1376 = vpop.f32.mrb[0].mxu0
        %v1377 = vadd.f32 %v1184, %v1376
        %v1378 = vpop.f32.mrb[0].mxu0
        %v1379 = vadd.f32 %v1186, %v1378
        %1380 = vmatprep.mubr.bf16.mxu0 0
        %1381 = vmatmul.mubr.bf16.gmra.mrb[0].mxu0 %v572
        %v1382 = vpop.f32.mrb[0].mxu0
        %v1383 = vadd.f32 %v1190, %v1382
        %v1384 = vpop.f32.mrb[0].mxu0
        %v1385 = vadd.f32 %v1192, %v1384
        %v1386 = vpop.f32.mrb[0].mxu0
        %v1387 = vadd.f32 %v1194, %v1386
        %v1388 = vpop.f32.mrb[0].mxu0
        %v1389 = vadd.f32 %v1196, %v1388
        %1390 = vdwg.mxu0
        %1391 = vmatprep.subr.bf16.mxu0 0
        %1392 = vmatpush1.bf16.msra.mxu0 %v863
        %1393 = vmatprep.subr.bf16.mxu0 0
        %1394 = vmatpush1.bf16.msra.mxu0 %v866
        %1395 = vmatprep.subr.bf16.mxu0 0
        %1396 = vmatpush1.bf16.msra.mxu0 %v869
        %1397 = vmatprep.subr.bf16.mxu0 0
        %1398 = vmatpush1.bf16.msra.mxu0 %v872
        %1399 = vmatprep.subr.bf16.mxu0 0
        %1400 = vmatpush1.bf16.msra.mxu0 %v875
        %1401 = vmatprep.subr.bf16.mxu0 0
        %1402 = vmatpush1.bf16.msra.mxu0 %v878
        %1403 = vmatprep.subr.bf16.mxu0 0
        %1404 = vmatpush1.bf16.msra.mxu0 %v881
        %1405 = vmatprep.subr.bf16.mxu0 0
        %1406 = vmatpush1.bf16.msra.mxu0 %v884
        %1407 = vmatprep.subr.bf16.mxu0 0
        %1408 = vmatpush1.bf16.msra.mxu0 %v887
        %1409 = vmatprep.subr.bf16.mxu0 0
        %1410 = vmatpush1.bf16.msra.mxu0 %v890
        %1411 = vmatprep.subr.bf16.mxu0 0
        %1412 = vmatpush1.bf16.msra.mxu0 %v893
        %1413 = vmatprep.subr.bf16.mxu0 0
        %1414 = vmatpush1.bf16.msra.mxu0 %v896
        %1415 = vmatprep.subr.bf16.mxu0 0
        %1416 = vmatpush1.bf16.msra.mxu0 %v899
        %1417 = vmatprep.subr.bf16.mxu0 0
        %1418 = vmatpush1.bf16.msra.mxu0 %v902
        %1419 = vmatprep.subr.bf16.mxu0 0
        %1420 = vmatpush1.bf16.msra.mxu0 %v905
        %1421 = vmatprep.subr.bf16.mxu0 0
        %1422 = vmatpush1.bf16.msra.mxu0 %v908
        %1423 = vmatprep.mubr.bf16.mxu0 %v526
        %1424 = vmatmul.mubr.bf16.gmra.mrb[0].mxu0 %v525
        %v1425 = vpop.f32.mrb[0].mxu0
        %v1426 = vadd.f32 0.0, %v1425
        %v1427 = vpop.f32.mrb[0].mxu0
        %v1428 = vpop.f32.mrb[0].mxu0
        %v1429 = vadd.f32 0.0, %v1428
        %v1430 = vpop.f32.mrb[0].mxu0
        %1431 = vmatprep.mubr.bf16.mxu0 %v529
        %1432 = vmatmul.mubr.bf16.gmra.mrb[0].mxu0 %v528
        %v1433 = vpop.f32.mrb[0].mxu0
        %v1434 = vadd.f32 0.0, %v1433
        %v1435 = vpop.f32.mrb[0].mxu0
        %v1436 = vpop.f32.mrb[0].mxu0
        %v1437 = vadd.f32 0.0, %v1436
        %v1438 = vpop.f32.mrb[0].mxu0
        %1439 = vmatprep.mubr.bf16.mxu0 %v532
        %1440 = vmatmul.mubr.bf16.gmra.mrb[0].mxu0 %v531
        %v1441 = vpop.f32.mrb[0].mxu0
        %v1442 = vadd.f32 0.0, %v1441
        %v1443 = vpop.f32.mrb[0].mxu0
        %v1444 = vpop.f32.mrb[0].mxu0
        %v1445 = vadd.f32 0.0, %v1444
        %v1446 = vpop.f32.mrb[0].mxu0
        %1447 = vmatprep.mubr.bf16.mxu0 %v535
        %1448 = vmatmul.mubr.bf16.gmra.mrb[0].mxu0 %v534
        %v1449 = vpop.f32.mrb[0].mxu0
        %v1450 = vadd.f32 0.0, %v1449
        %v1451 = vpop.f32.mrb[0].mxu0
        %v1452 = vpop.f32.mrb[0].mxu0
        %v1453 = vadd.f32 0.0, %v1452
        %v1454 = vpop.f32.mrb[0].mxu0
        %1455 = vmatprep.mubr.bf16.mxu0 %v538
        %1456 = vmatmul.mubr.bf16.gmra.mrb[0].mxu0 %v537
        %v1457 = vpop.f32.mrb[0].mxu0
        %v1458 = vadd.f32 0.0, %v1457
        %v1459 = vpop.f32.mrb[0].mxu0
        %v1460 = vpop.f32.mrb[0].mxu0
        %v1461 = vadd.f32 0.0, %v1460
        %v1462 = vpop.f32.mrb[0].mxu0
        %1463 = vmatprep.mubr.bf16.mxu0 %v541
        %1464 = vmatmul.mubr.bf16.gmra.mrb[0].mxu0 %v540
        %v1465 = vpop.f32.mrb[0].mxu0
        %v1466 = vadd.f32 0.0, %v1465
        %v1467 = vpop.f32.mrb[0].mxu0
        %v1468 = vpop.f32.mrb[0].mxu0
        %v1469 = vadd.f32 0.0, %v1468
        %v1470 = vpop.f32.mrb[0].mxu0
        %1471 = vmatprep.mubr.bf16.mxu0 %v544
        %1472 = vmatmul.mubr.bf16.gmra.mrb[0].mxu0 %v543
        %v1473 = vpop.f32.mrb[0].mxu0
        %v1474 = vadd.f32 0.0, %v1473
        %v1475 = vpop.f32.mrb[0].mxu0
        %v1476 = vpop.f32.mrb[0].mxu0
        %v1477 = vadd.f32 0.0, %v1476
        %v1478 = vpop.f32.mrb[0].mxu0
        %1479 = vmatprep.mubr.bf16.mxu0 %v547
        %1480 = vmatmul.mubr.bf16.gmra.mrb[0].mxu0 %v546
        %v1481 = vpop.f32.mrb[0].mxu0
        %v1482 = vadd.f32 0.0, %v1481
        %v1483 = vpop.f32.mrb[0].mxu0
        %v1484 = vpop.f32.mrb[0].mxu0
        %v1485 = vadd.f32 0.0, %v1484
        %v1486 = vpop.f32.mrb[0].mxu0
        %1487 = vmatprep.mubr.bf16.mxu0 %v550
        %1488 = vmatmul.mubr.bf16.gmra.mrb[0].mxu0 %v549
        %v1489 = vpop.f32.mrb[0].mxu0
        %v1490 = vadd.f32 0.0, %v1489
        %v1491 = vpop.f32.mrb[0].mxu0
        %v1492 = vpop.f32.mrb[0].mxu0
        %v1493 = vadd.f32 0.0, %v1492
        %v1494 = vpop.f32.mrb[0].mxu0
        %1495 = vmatprep.mubr.bf16.mxu0 %v553
        %1496 = vmatmul.mubr.bf16.gmra.mrb[0].mxu0 %v552
        %v1497 = vpop.f32.mrb[0].mxu0
        %v1498 = vadd.f32 0.0, %v1497
        %v1499 = vpop.f32.mrb[0].mxu0
        %v1500 = vpop.f32.mrb[0].mxu0
        %v1501 = vadd.f32 0.0, %v1500
        %v1502 = vpop.f32.mrb[0].mxu0
        %1503 = vmatprep.mubr.bf16.mxu0 %v556
        %1504 = vmatmul.mubr.bf16.gmra.mrb[0].mxu0 %v555
        %v1505 = vpop.f32.mrb[0].mxu0
        %v1506 = vadd.f32 0.0, %v1505
        %v1507 = vpop.f32.mrb[0].mxu0
        %v1508 = vpop.f32.mrb[0].mxu0
        %v1509 = vadd.f32 0.0, %v1508
        %v1510 = vpop.f32.mrb[0].mxu0
        %1511 = vmatprep.mubr.bf16.mxu0 %v559
        %1512 = vmatmul.mubr.bf16.gmra.mrb[0].mxu0 %v558
        %v1513 = vpop.f32.mrb[0].mxu0
        %v1514 = vadd.f32 0.0, %v1513
        %v1515 = vpop.f32.mrb[0].mxu0
        %v1516 = vpop.f32.mrb[0].mxu0
        %v1517 = vadd.f32 0.0, %v1516
        %v1518 = vpop.f32.mrb[0].mxu0
        %1519 = vmatprep.mubr.bf16.mxu0 %v562
        %1520 = vmatmul.mubr.bf16.gmra.mrb[0].mxu0 %v561
        %v1521 = vpop.f32.mrb[0].mxu0
        %v1522 = vadd.f32 0.0, %v1521
        %v1523 = vpop.f32.mrb[0].mxu0
        %v1524 = vpop.f32.mrb[0].mxu0
        %v1525 = vadd.f32 0.0, %v1524
        %v1526 = vpop.f32.mrb[0].mxu0
        %1527 = vmatprep.mubr.bf16.mxu0 %v565
        %1528 = vmatmul.mubr.bf16.gmra.mrb[0].mxu0 %v564
        %v1529 = vpop.f32.mrb[0].mxu0
        %v1530 = vadd.f32 0.0, %v1529
        %v1531 = vpop.f32.mrb[0].mxu0
        %v1532 = vpop.f32.mrb[0].mxu0
        %v1533 = vadd.f32 0.0, %v1532
        %v1534 = vpop.f32.mrb[0].mxu0
        %1535 = vmatprep.mubr.bf16.mxu0 %v568
        %1536 = vmatmul.mubr.bf16.gmra.mrb[0].mxu0 %v567
        %v1537 = vpop.f32.mrb[0].mxu0
        %v1538 = vadd.f32 0.0, %v1537
        %v1539 = vpop.f32.mrb[0].mxu0
        %v1540 = vpop.f32.mrb[0].mxu0
        %v1541 = vadd.f32 0.0, %v1540
        %v1542 = vpop.f32.mrb[0].mxu0
        %1543 = vmatprep.mubr.bf16.mxu0 %v571
        %1544 = vmatmul.mubr.bf16.gmra.mrb[0].mxu0 %v570
        %v1545 = vpop.f32.mrb[0].mxu0
        %v1546 = vadd.f32 0.0, %v1545
        %v1547 = vpop.f32.mrb[0].mxu0
        %v1548 = vpop.f32.mrb[0].mxu0
        %v1549 = vadd.f32 0.0, %v1548
        %v1550 = vpop.f32.mrb[0].mxu0
        %1551 = vdwg.mxu0
        %1552 = vmatprep.subr.bf16.mxu0 0
        %1553 = vmatpush1.bf16.msra.mxu0 %v911
        %1554 = vmatprep.subr.bf16.mxu0 0
        %1555 = vmatpush1.bf16.msra.mxu0 %v914
        %1556 = vmatprep.subr.bf16.mxu0 0
        %1557 = vmatpush1.bf16.msra.mxu0 %v917
        %1558 = vmatprep.subr.bf16.mxu0 0
        %1559 = vmatpush1.bf16.msra.mxu0 %v920
        %1560 = vmatprep.subr.bf16.mxu0 0
        %1561 = vmatpush1.bf16.msra.mxu0 %v923
        %1562 = vmatprep.subr.bf16.mxu0 0
        %1563 = vmatpush1.bf16.msra.mxu0 %v926
        %1564 = vmatprep.subr.bf16.mxu0 0
        %1565 = vmatpush1.bf16.msra.mxu0 %v929
        %1566 = vmatprep.subr.bf16.mxu0 0
        %1567 = vmatpush1.bf16.msra.mxu0 %v932
        %1568 = vmatprep.subr.bf16.mxu0 0
        %1569 = vmatpush1.bf16.msra.mxu0 0
        %1570 = vmatprep.subr.bf16.mxu0 0
        %1571 = vmatpush1.bf16.msra.mxu0 0
        %1572 = vmatprep.subr.bf16.mxu0 0
        %1573 = vmatpush1.bf16.msra.mxu0 0
        %1574 = vmatprep.subr.bf16.mxu0 0
        %1575 = vmatpush1.bf16.msra.mxu0 0
        %1576 = vmatprep.subr.bf16.mxu0 0
        %1577 = vmatpush1.bf16.msra.mxu0 0
        %1578 = vmatprep.subr.bf16.mxu0 0
        %1579 = vmatpush1.bf16.msra.mxu0 0
        %1580 = vmatprep.subr.bf16.mxu0 0
        %1581 = vmatpush1.bf16.msra.mxu0 0
        %1582 = vmatprep.subr.bf16.mxu0 0
        %1583 = vmatpush1.bf16.msra.mxu0 0
        %1584 = vmatprep.mubr.bf16.mxu0 0
        %1585 = vmatmul.mubr.bf16.gmra.mrb[0].mxu0 %v527
        %v1586 = vpop.f32.mrb[0].mxu0
        %v1587 = vadd.f32 %v1426, %v1586
        %v1588 = vpop.f32.mrb[0].mxu0
        %v1589 = vpop.f32.mrb[0].mxu0
        %v1590 = vadd.f32 %v1429, %v1589
        %v1591 = vpop.f32.mrb[0].mxu0
        %1592 = vmatprep.mubr.bf16.mxu0 0
        %1593 = vmatmul.mubr.bf16.gmra.mrb[0].mxu0 %v530
        %v1594 = vpop.f32.mrb[0].mxu0
        %v1595 = vadd.f32 %v1434, %v1594
        %v1596 = vpop.f32.mrb[0].mxu0
        %v1597 = vpop.f32.mrb[0].mxu0
        %v1598 = vadd.f32 %v1437, %v1597
        %v1599 = vpop.f32.mrb[0].mxu0
        %1600 = vmatprep.mubr.bf16.mxu0 0
        %1601 = vmatmul.mubr.bf16.gmra.mrb[0].mxu0 %v533
        %v1602 = vpop.f32.mrb[0].mxu0
        %v1603 = vadd.f32 %v1442, %v1602
        %v1604 = vpop.f32.mrb[0].mxu0
        %v1605 = vpop.f32.mrb[0].mxu0
        %v1606 = vadd.f32 %v1445, %v1605
        %v1607 = vpop.f32.mrb[0].mxu0
        %1608 = vmatprep.mubr.bf16.mxu0 0
        %1609 = vmatmul.mubr.bf16.gmra.mrb[0].mxu0 %v536
        %v1610 = vpop.f32.mrb[0].mxu0
        %v1611 = vadd.f32 %v1450, %v1610
        %v1612 = vpop.f32.mrb[0].mxu0
        %v1613 = vpop.f32.mrb[0].mxu0
        %v1614 = vadd.f32 %v1453, %v1613
        %v1615 = vpop.f32.mrb[0].mxu0
        %1616 = vmatprep.mubr.bf16.mxu0 0
        %1617 = vmatmul.mubr.bf16.gmra.mrb[0].mxu0 %v539
        %v1618 = vpop.f32.mrb[0].mxu0
        %v1619 = vadd.f32 %v1458, %v1618
        %v1620 = vpop.f32.mrb[0].mxu0
        %v1621 = vpop.f32.mrb[0].mxu0
        %v1622 = vadd.f32 %v1461, %v1621
        %v1623 = vpop.f32.mrb[0].mxu0
        %1624 = vmatprep.mubr.bf16.mxu0 0
        %1625 = vmatmul.mubr.bf16.gmra.mrb[0].mxu0 %v542
        %v1626 = vpop.f32.mrb[0].mxu0
        %v1627 = vadd.f32 %v1466, %v1626
        %v1628 = vpop.f32.mrb[0].mxu0
        %v1629 = vpop.f32.mrb[0].mxu0
        %v1630 = vadd.f32 %v1469, %v1629
        %v1631 = vpop.f32.mrb[0].mxu0
        %1632 = vmatprep.mubr.bf16.mxu0 0
        %1633 = vmatmul.mubr.bf16.gmra.mrb[0].mxu0 %v545
        %v1634 = vpop.f32.mrb[0].mxu0
        %v1635 = vadd.f32 %v1474, %v1634
        %v1636 = vpop.f32.mrb[0].mxu0
        %v1637 = vpop.f32.mrb[0].mxu0
        %v1638 = vadd.f32 %v1477, %v1637
        %v1639 = vpop.f32.mrb[0].mxu0
        %1640 = vmatprep.mubr.bf16.mxu0 0
        %1641 = vmatmul.mubr.bf16.gmra.mrb[0].mxu0 %v548
        %v1642 = vpop.f32.mrb[0].mxu0
        %v1643 = vadd.f32 %v1482, %v1642
        %v1644 = vpop.f32.mrb[0].mxu0
        %v1645 = vpop.f32.mrb[0].mxu0
        %v1646 = vadd.f32 %v1485, %v1645
        %v1647 = vpop.f32.mrb[0].mxu0
        %1648 = vmatprep.mubr.bf16.mxu0 0
        %1649 = vmatmul.mubr.bf16.gmra.mrb[0].mxu0 %v551
        %v1650 = vpop.f32.mrb[0].mxu0
        %v1651 = vadd.f32 %v1490, %v1650
        %v1652 = vpop.f32.mrb[0].mxu0
        %v1653 = vpop.f32.mrb[0].mxu0
        %v1654 = vadd.f32 %v1493, %v1653
        %v1655 = vpop.f32.mrb[0].mxu0
        %1656 = vmatprep.mubr.bf16.mxu0 0
        %1657 = vmatmul.mubr.bf16.gmra.mrb[0].mxu0 %v554
        %v1658 = vpop.f32.mrb[0].mxu0
        %v1659 = vadd.f32 %v1498, %v1658
        %v1660 = vpop.f32.mrb[0].mxu0
        %v1661 = vpop.f32.mrb[0].mxu0
        %v1662 = vadd.f32 %v1501, %v1661
        %v1663 = vpop.f32.mrb[0].mxu0
        %1664 = vmatprep.mubr.bf16.mxu0 0
        %1665 = vmatmul.mubr.bf16.gmra.mrb[0].mxu0 %v557
        %v1666 = vpop.f32.mrb[0].mxu0
        %v1667 = vadd.f32 %v1506, %v1666
        %v1668 = vpop.f32.mrb[0].mxu0
        %v1669 = vpop.f32.mrb[0].mxu0
        %v1670 = vadd.f32 %v1509, %v1669
        %v1671 = vpop.f32.mrb[0].mxu0
        %1672 = vmatprep.mubr.bf16.mxu0 0
        %1673 = vmatmul.mubr.bf16.gmra.mrb[0].mxu0 %v560
        %v1674 = vpop.f32.mrb[0].mxu0
        %v1675 = vadd.f32 %v1514, %v1674
        %v1676 = vpop.f32.mrb[0].mxu0
        %v1677 = vpop.f32.mrb[0].mxu0
        %v1678 = vadd.f32 %v1517, %v1677
        %v1679 = vpop.f32.mrb[0].mxu0
        %1680 = vmatprep.mubr.bf16.mxu0 0
        %1681 = vmatmul.mubr.bf16.gmra.mrb[0].mxu0 %v563
        %v1682 = vpop.f32.mrb[0].mxu0
        %v1683 = vadd.f32 %v1522, %v1682
        %v1684 = vpop.f32.mrb[0].mxu0
        %v1685 = vpop.f32.mrb[0].mxu0
        %v1686 = vadd.f32 %v1525, %v1685
        %v1687 = vpop.f32.mrb[0].mxu0
        %1688 = vmatprep.mubr.bf16.mxu0 0
        %1689 = vmatmul.mubr.bf16.gmra.mrb[0].mxu0 %v566
        %v1690 = vpop.f32.mrb[0].mxu0
        %v1691 = vadd.f32 %v1530, %v1690
        %v1692 = vpop.f32.mrb[0].mxu0
        %v1693 = vpop.f32.mrb[0].mxu0
        %v1694 = vadd.f32 %v1533, %v1693
        %v1695 = vpop.f32.mrb[0].mxu0
        %1696 = vmatprep.mubr.bf16.mxu0 0
        %1697 = vmatmul.mubr.bf16.gmra.mrb[0].mxu0 %v569
        %v1698 = vpop.f32.mrb[0].mxu0
        %v1699 = vadd.f32 %v1538, %v1698
        %v1700 = vpop.f32.mrb[0].mxu0
        %v1701 = vpop.f32.mrb[0].mxu0
        %v1702 = vadd.f32 %v1541, %v1701
        %v1703 = vpop.f32.mrb[0].mxu0
        %1704 = vmatprep.mubr.bf16.mxu0 0
        %1705 = vmatmul.mubr.bf16.gmra.mrb[0].mxu0 %v572
        %v1706 = vpop.f32.mrb[0].mxu0
        %v1707 = vadd.f32 %v1546, %v1706
        %v1708 = vpop.f32.mrb[0].mxu0
        %v1709 = vpop.f32.mrb[0].mxu0
        %v1710 = vadd.f32 %v1549, %v1709
        %v1711 = vpop.f32.mrb[0].mxu0
        %1712 = vdwg.mxu0
        %v1713 = vpack.c.bf16 %v1237, %v1233
        %v1714 = vpack.c.bf16 %v1239, %v1235
        %v1715 = vpack.c.bf16 %v1590, %v1587
        %v1716 = vpack.c.bf16 %v1247, %v1243
        %v1717 = vpack.c.bf16 %v1249, %v1245
        %v1718 = vpack.c.bf16 %v1598, %v1595
        %v1719 = vpack.c.bf16 %v1257, %v1253
        %v1720 = vpack.c.bf16 %v1259, %v1255
        %v1721 = vpack.c.bf16 %v1606, %v1603
        %v1722 = vpack.c.bf16 %v1267, %v1263
        %v1723 = vpack.c.bf16 %v1269, %v1265
        %v1724 = vpack.c.bf16 %v1614, %v1611
        %v1725 = vpack.c.bf16 %v1277, %v1273
        %v1726 = vpack.c.bf16 %v1279, %v1275
        %v1727 = vpack.c.bf16 %v1622, %v1619
        %v1728 = vpack.c.bf16 %v1287, %v1283
        %v1729 = vpack.c.bf16 %v1289, %v1285
        %v1730 = vpack.c.bf16 %v1630, %v1627
        %v1731 = vpack.c.bf16 %v1297, %v1293
        %v1732 = vpack.c.bf16 %v1299, %v1295
        %v1733 = vpack.c.bf16 %v1638, %v1635
        %v1734 = vpack.c.bf16 %v1307, %v1303
        %v1735 = vpack.c.bf16 %v1309, %v1305
        %v1736 = vpack.c.bf16 %v1646, %v1643
        %v1737 = vpack.c.bf16 %v1317, %v1313
        %v1738 = vpack.c.bf16 %v1319, %v1315
        %v1739 = vpack.c.bf16 %v1654, %v1651
        %v1740 = vpack.c.bf16 %v1327, %v1323
        %v1741 = vpack.c.bf16 %v1329, %v1325
        %v1742 = vpack.c.bf16 %v1662, %v1659
        %v1743 = vpack.c.bf16 %v1337, %v1333
        %v1744 = vpack.c.bf16 %v1339, %v1335
        %v1745 = vpack.c.bf16 %v1670, %v1667
        %v1746 = vpack.c.bf16 %v1347, %v1343
        %v1747 = vpack.c.bf16 %v1349, %v1345
        %v1748 = vpack.c.bf16 %v1678, %v1675
        %v1749 = vpack.c.bf16 %v1357, %v1353
        %v1750 = vpack.c.bf16 %v1359, %v1355
        %v1751 = vpack.c.bf16 %v1686, %v1683
        %v1752 = vpack.c.bf16 %v1367, %v1363
        %v1753 = vpack.c.bf16 %v1369, %v1365
        %v1754 = vpack.c.bf16 %v1694, %v1691
        %v1755 = vpack.c.bf16 %v1377, %v1373
        %v1756 = vpack.c.bf16 %v1379, %v1375
        %v1757 = vpack.c.bf16 %v1702, %v1699
        %v1758 = vpack.c.bf16 %v1387, %v1383
        %v1759 = vpack.c.bf16 %v1389, %v1385
        %v1760 = vpack.c.bf16 %v1710, %v1707
        %v1809 = vunpack.c.l.b16 %v1713
        %v1810 = vunpack.c.l.b16 %v1714
        %v1811 = vunpack.c.l.b16 %v1715
        %v1812 = vunpack.c.h.b16 %v1713
        %v1813 = vunpack.c.h.b16 %v1714
        %v1814 = vunpack.c.h.b16 %v1715
        %v1815 = vunpack.c.l.b16 %v1716
        %v1816 = vunpack.c.l.b16 %v1717
        %v1817 = vunpack.c.l.b16 %v1718
        %v1818 = vunpack.c.h.b16 %v1716
        %v1819 = vunpack.c.h.b16 %v1717
        %v1820 = vunpack.c.h.b16 %v1718
        %v1821 = vunpack.c.l.b16 %v1719
        %v1822 = vunpack.c.l.b16 %v1720
        %v1823 = vunpack.c.l.b16 %v1721
        %v1824 = vunpack.c.h.b16 %v1719
        %v1825 = vunpack.c.h.b16 %v1720
        %v1826 = vunpack.c.h.b16 %v1721
        %v1827 = vunpack.c.l.b16 %v1722
        %v1828 = vunpack.c.l.b16 %v1723
        %v1829 = vunpack.c.l.b16 %v1724
        %v1830 = vunpack.c.h.b16 %v1722
        %v1831 = vunpack.c.h.b16 %v1723
        %v1832 = vunpack.c.h.b16 %v1724
        %v1833 = vunpack.c.l.b16 %v1725
        %v1834 = vunpack.c.l.b16 %v1726
        %v1835 = vunpack.c.l.b16 %v1727
        %v1836 = vunpack.c.h.b16 %v1725
        %v1837 = vunpack.c.h.b16 %v1726
        %v1838 = vunpack.c.h.b16 %v1727
        %v1839 = vunpack.c.l.b16 %v1728
        %v1840 = vunpack.c.l.b16 %v1729
        %v1841 = vunpack.c.l.b16 %v1730
        %v1842 = vunpack.c.h.b16 %v1728
        %v1843 = vunpack.c.h.b16 %v1729
        %v1844 = vunpack.c.h.b16 %v1730
        %v1845 = vunpack.c.l.b16 %v1731
        %v1846 = vunpack.c.l.b16 %v1732
        %v1847 = vunpack.c.l.b16 %v1733
        %v1848 = vunpack.c.h.b16 %v1731
        %v1849 = vunpack.c.h.b16 %v1732
        %v1850 = vunpack.c.h.b16 %v1733
        %v1851 = vunpack.c.l.b16 %v1734
        %v1852 = vunpack.c.l.b16 %v1735
        %v1853 = vunpack.c.l.b16 %v1736
        %v1854 = vunpack.c.h.b16 %v1734
        %v1855 = vunpack.c.h.b16 %v1735
        %v1856 = vunpack.c.h.b16 %v1736
        %v1857 = vunpack.c.l.b16 %v1737
        %v1858 = vunpack.c.l.b16 %v1738
        %v1859 = vunpack.c.l.b16 %v1739
        %v1860 = vunpack.c.h.b16 %v1737
        %v1861 = vunpack.c.h.b16 %v1738
        %v1862 = vunpack.c.h.b16 %v1739
        %v1863 = vunpack.c.l.b16 %v1740
        %v1864 = vunpack.c.l.b16 %v1741
        %v1865 = vunpack.c.l.b16 %v1742
        %v1866 = vunpack.c.h.b16 %v1740
        %v1867 = vunpack.c.h.b16 %v1741
        %v1868 = vunpack.c.h.b16 %v1742
        %v1869 = vunpack.c.l.b16 %v1743
        %v1870 = vunpack.c.l.b16 %v1744
        %v1871 = vunpack.c.l.b16 %v1745
        %v1872 = vunpack.c.h.b16 %v1743
        %v1873 = vunpack.c.h.b16 %v1744
        %v1874 = vunpack.c.h.b16 %v1745
        %v1875 = vunpack.c.l.b16 %v1746
        %v1876 = vunpack.c.l.b16 %v1747
        %v1877 = vunpack.c.l.b16 %v1748
        %v1878 = vunpack.c.h.b16 %v1746
        %v1879 = vunpack.c.h.b16 %v1747
        %v1880 = vunpack.c.h.b16 %v1748
        %v1881 = vunpack.c.l.b16 %v1749
        %v1882 = vunpack.c.l.b16 %v1750
        %v1883 = vunpack.c.l.b16 %v1751
        %v1884 = vunpack.c.h.b16 %v1749
        %v1885 = vunpack.c.h.b16 %v1750
        %v1886 = vunpack.c.h.b16 %v1751
        %v1887 = vunpack.c.l.b16 %v1752
        %v1888 = vunpack.c.l.b16 %v1753
        %v1889 = vunpack.c.l.b16 %v1754
        %v1890 = vunpack.c.h.b16 %v1752
        %v1891 = vunpack.c.h.b16 %v1753
        %v1892 = vunpack.c.h.b16 %v1754
        %v1893 = vunpack.c.l.b16 %v1755
        %v1894 = vunpack.c.l.b16 %v1756
        %v1895 = vunpack.c.l.b16 %v1757
        %v1896 = vunpack.c.h.b16 %v1755
        %v1897 = vunpack.c.h.b16 %v1756
        %v1898 = vunpack.c.h.b16 %v1757
        %v1899 = vunpack.c.l.b16 %v1758
        %v1900 = vunpack.c.l.b16 %v1759
        %v1901 = vunpack.c.l.b16 %v1760
        %v1902 = vunpack.c.h.b16 %v1758
        %v1903 = vunpack.c.h.b16 %v1759
        %v1904 = vunpack.c.h.b16 %v1760
        %v1905 = vpack.c.b16 %v1810, %v1809
        %v1906 = vpack.c.b16 %v1811, %v1811
        %v1907 = vpack.c.b16 %v1813, %v1812
        %v1908 = vpack.c.b16 %v1814, %v1814
        %v1909 = vpack.c.b16 %v1816, %v1815
        %v1910 = vpack.c.b16 %v1817, %v1817
        %v1911 = vpack.c.b16 %v1819, %v1818
        %v1912 = vpack.c.b16 %v1820, %v1820
        %v1913 = vpack.c.b16 %v1822, %v1821
        %v1914 = vpack.c.b16 %v1823, %v1823
        %v1915 = vpack.c.b16 %v1825, %v1824
        %v1916 = vpack.c.b16 %v1826, %v1826
        %v1917 = vpack.c.b16 %v1828, %v1827
        %v1918 = vpack.c.b16 %v1829, %v1829
        %v1919 = vpack.c.b16 %v1831, %v1830
        %v1920 = vpack.c.b16 %v1832, %v1832
        %v1921 = vpack.c.b16 %v1834, %v1833
        %v1922 = vpack.c.b16 %v1835, %v1835
        %v1923 = vpack.c.b16 %v1837, %v1836
        %v1924 = vpack.c.b16 %v1838, %v1838
        %v1925 = vpack.c.b16 %v1840, %v1839
        %v1926 = vpack.c.b16 %v1841, %v1841
        %v1927 = vpack.c.b16 %v1843, %v1842
        %v1928 = vpack.c.b16 %v1844, %v1844
        %v1929 = vpack.c.b16 %v1846, %v1845
        %v1930 = vpack.c.b16 %v1847, %v1847
        %v1931 = vpack.c.b16 %v1849, %v1848
        %v1932 = vpack.c.b16 %v1850, %v1850
        %v1933 = vpack.c.b16 %v1852, %v1851
        %v1934 = vpack.c.b16 %v1853, %v1853
        %v1935 = vpack.c.b16 %v1855, %v1854
        %v1936 = vpack.c.b16 %v1856, %v1856
        %v1937 = vpack.c.b16 %v1858, %v1857
        %v1938 = vpack.c.b16 %v1859, %v1859
        %v1939 = vpack.c.b16 %v1861, %v1860
        %v1940 = vpack.c.b16 %v1862, %v1862
        %v1941 = vpack.c.b16 %v1864, %v1863
        %v1942 = vpack.c.b16 %v1865, %v1865
        %v1943 = vpack.c.b16 %v1867, %v1866
        %v1944 = vpack.c.b16 %v1868, %v1868
        %v1945 = vpack.c.b16 %v1870, %v1869
        %v1946 = vpack.c.b16 %v1871, %v1871
        %v1947 = vpack.c.b16 %v1873, %v1872
        %v1948 = vpack.c.b16 %v1874, %v1874
        %v1949 = vpack.c.b16 %v1876, %v1875
        %v1950 = vpack.c.b16 %v1877, %v1877
        %v1951 = vpack.c.b16 %v1879, %v1878
        %v1952 = vpack.c.b16 %v1880, %v1880
        %v1953 = vpack.c.b16 %v1882, %v1881
        %v1954 = vpack.c.b16 %v1883, %v1883
        %v1955 = vpack.c.b16 %v1885, %v1884
        %v1956 = vpack.c.b16 %v1886, %v1886
        %v1957 = vpack.c.b16 %v1888, %v1887
        %v1958 = vpack.c.b16 %v1889, %v1889
        %v1959 = vpack.c.b16 %v1891, %v1890
        %v1960 = vpack.c.b16 %v1892, %v1892
        %v1961 = vpack.c.b16 %v1894, %v1893
        %v1962 = vpack.c.b16 %v1895, %v1895
        %v1963 = vpack.c.b16 %v1897, %v1896
        %v1964 = vpack.c.b16 %v1898, %v1898
        %v1965 = vpack.c.b16 %v1900, %v1899
        %v1966 = vpack.c.b16 %v1901, %v1901
        %v1967 = vpack.c.b16 %v1903, %v1902
        %v1968 = vpack.c.b16 %v1904, %v1904
        %2033 = vst [vmem:[%s199] sm:$0xff] %v1905
        %2034 = vst [vmem:[%s199 + $0x8] sm:$0xf] %v1906
        %2035 = vst [vmem:[%s199 + $0xc] sm:$0xff] %v1907
        %2036 = vst [vmem:[%s199 + $0x14] sm:$0xf] %v1908
        %2037 = vst [vmem:[%s199 + $0x18] sm:$0xff] %v1909
        %2038 = vst [vmem:[%s199 + $0x20] sm:$0xf] %v1910
        %2039 = vst [vmem:[%s199 + $0x24] sm:$0xff] %v1911
        %2040 = vst [vmem:[%s199 + $0x2c] sm:$0xf] %v1912
        %2041 = vst [vmem:[%s199 + $0x30] sm:$0xff] %v1913
        %2042 = vst [vmem:[%s199 + $0x38] sm:$0xf] %v1914
        %2043 = vst [vmem:[%s199 + $0x3c] sm:$0xff] %v1915
        %2044 = vst [vmem:[%s199 + $0x44] sm:$0xf] %v1916
        %2045 = vst [vmem:[%s199 + $0x48] sm:$0xff] %v1917
        %2046 = vst [vmem:[%s199 + $0x50] sm:$0xf] %v1918
        %2047 = vst [vmem:[%s199 + $0x54] sm:$0xff] %v1919
        %2048 = vst [vmem:[%s199 + $0x5c] sm:$0xf] %v1920
        %2049 = vst [vmem:[%s199 + $0x60] sm:$0xff] %v1921
        %2050 = vst [vmem:[%s199 + $0x68] sm:$0xf] %v1922
        %2051 = vst [vmem:[%s199 + $0x6c] sm:$0xff] %v1923
        %2052 = vst [vmem:[%s199 + $0x74] sm:$0xf] %v1924
        %2053 = vst [vmem:[%s199 + $0x78] sm:$0xff] %v1925
        %2054 = vst [vmem:[%s199 + $0x80] sm:$0xf] %v1926
        %2055 = vst [vmem:[%s199 + $0x84] sm:$0xff] %v1927
        %2056 = vst [vmem:[%s199 + $0x8c] sm:$0xf] %v1928
        %2057 = vst [vmem:[%s199 + $0x90] sm:$0xff] %v1929
        %2058 = vst [vmem:[%s199 + $0x98] sm:$0xf] %v1930
        %2059 = vst [vmem:[%s199 + $0x9c] sm:$0xff] %v1931
        %2060 = vst [vmem:[%s199 + $0xa4] sm:$0xf] %v1932
        %2061 = vst [vmem:[%s199 + $0xa8] sm:$0xff] %v1933
        %2062 = vst [vmem:[%s199 + $0xb0] sm:$0xf] %v1934
        %2063 = vst [vmem:[%s199 + $0xb4] sm:$0xff] %v1935
        %2064 = vst [vmem:[%s199 + $0xbc] sm:$0xf] %v1936
        %2065 = vst [vmem:[%s199 + $0xc0] sm:$0xff] %v1937
        %2066 = vst [vmem:[%s199 + $0xc8] sm:$0xf] %v1938
        %2067 = vst [vmem:[%s199 + $0xcc] sm:$0xff] %v1939
        %2068 = vst [vmem:[%s199 + $0xd4] sm:$0xf] %v1940
        %2069 = vst [vmem:[%s199 + $0xd8] sm:$0xff] %v1941
        %2070 = vst [vmem:[%s199 + $0xe0] sm:$0xf] %v1942
        %2071 = vst [vmem:[%s199 + $0xe4] sm:$0xff] %v1943
        %2072 = vst [vmem:[%s199 + $0xec] sm:$0xf] %v1944
        %2073 = vst [vmem:[%s199 + $0xf0] sm:$0xff] %v1945
        %2074 = vst [vmem:[%s199 + $0xf8] sm:$0xf] %v1946
        %2075 = vst [vmem:[%s199 + $0xfc] sm:$0xff] %v1947
        %2076 = vst [vmem:[%s199 + $0x104] sm:$0xf] %v1948
        %2077 = vst [vmem:[%s199 + $0x108] sm:$0xff] %v1949
        %2078 = vst [vmem:[%s199 + $0x110] sm:$0xf] %v1950
        %2079 = vst [vmem:[%s199 + $0x114] sm:$0xff] %v1951
        %2080 = vst [vmem:[%s199 + $0x11c] sm:$0xf] %v1952
        %2081 = vst [vmem:[%s199 + $0x120] sm:$0xff] %v1953
        %2082 = vst [vmem:[%s199 + $0x128] sm:$0xf] %v1954
        %2083 = vst [vmem:[%s199 + $0x12c] sm:$0xff] %v1955
        %2084 = vst [vmem:[%s199 + $0x134] sm:$0xf] %v1956
        %2085 = vst [vmem:[%s199 + $0x138] sm:$0xff] %v1957
        %2086 = vst [vmem:[%s199 + $0x140] sm:$0xf] %v1958
        %2087 = vst [vmem:[%s199 + $0x144] sm:$0xff] %v1959
        %2088 = vst [vmem:[%s199 + $0x14c] sm:$0xf] %v1960
        %2089 = vst [vmem:[%s199 + $0x150] sm:$0xff] %v1961
        %2090 = vst [vmem:[%s199 + $0x158] sm:$0xf] %v1962
        %2091 = vst [vmem:[%s199 + $0x15c] sm:$0xff] %v1963
        %2092 = vst [vmem:[%s199 + $0x164] sm:$0xf] %v1964
        %2093 = vst [vmem:[%s199 + $0x168] sm:$0xff] %v1965
        %2094 = vst [vmem:[%s199 + $0x170] sm:$0xf] %v1966
        %2095 = vst [vmem:[%s199 + $0x174] sm:$0xff] %v1967
        %2096 = vst [vmem:[%s199 + $0x17c] sm:$0xf] %v1968
        %s2097 = sand.u32 %s94, 1
        %s2098 = scalar_lea.sflag [#allocation4], %s2097
        %s2099 = sand.u32 %s94, 1
        %s2100 = smul.addr %s2099, 384
        %s2101 = scalar_lea.vmem [#allocation7], %s2100
        // Predicated region
        $region37: #{tpu_custom_call.1} parent=27 // pred_check
          %p2102 = pneg %p104
        $region38: #{tpu_custom_call.1} parent=27 // pred_check_branch
          %2104 = sbr.rel (%p2102) target = $region40
        $region39: #{tpu_custom_call.1} parent=27 // pred_region
          %s2105 = smul.u32 32, %s24
          %s2106 = smul.u32 3, %s25
          %s2108 = ssub.s32 6144, 6144
          %2109 = vsyncadd %s2098, %s2108
          %s2110 = smul.addr %s2105, 9
          %s2111 = sadd.s32 %s2106, %s2110
          %s2112 = smul.addr %s2111, 64
          %s2113 = scalar_lea.hbm %s2, %s2112
          %s2114 = sshll.u32 %s2101, 4
          %s2115 = int_to_ptr.vmem [resolvable:$true] %s2114
          %2120 = dma.vmem_to_hbm [thread:$0]  %s2115, 6144, %s2113, %s2098, 192, 576, 12
        $region40: #{tpu_custom_call.1} parent=27 // pred_fallthru
          _
      $region28: #{tpu_custom_call.1} parent=5 // pred_fallthru
        _
      %p2121 = scmp.le.s32.totalorder 2, %s15
      // Predicated region
      $region41: #{tpu_custom_call.1} parent=5 // pred_check
        %p2122 = pneg %p2121
      $region42: #{tpu_custom_call.1} parent=5 // pred_check_branch
        %2124 = sbr.rel (%p2122) target = $region44
      $region43: #{tpu_custom_call.1} parent=5 // pred_region
        %s2125 = ssub.s32 %s15, 2
        // Predicated region
        $region45: #{tpu_custom_call.1} parent=43 // pred_check
          %p2126 = pneg %p110
        $region46: #{tpu_custom_call.1} parent=43 // pred_check_branch
          %2128 = sbr.rel (%p2126) target = $region48
        $region47: #{tpu_custom_call.1} parent=43 // pred_region
          %s2129 = sand.u32 %s95, 1
          %s2130 = scalar_lea.sflag [#allocation4], %s2129
          %s2131 = sand.u32 %s95, 1
          %s2132 = smul.addr %s2131, 384
          %s2133 = scalar_lea.vmem [#allocation7], %s2132
          %2134 = dma.done %s2130, 6144
        $region48: #{tpu_custom_call.1} parent=43 // pred_fallthru
          _
      $region44: #{tpu_custom_call.1} parent=5 // pred_fallthru
        _
    $region6: #{tpu_custom_call.1} parent=1 // loop_footer
      %s19 = sadd.s32 1, %s15
    $region7: #{tpu_custom_call.1} parent=1 // loop_footer_branch
      %14 = sbr.rel target = $region3
    $region8: #{tpu_custom_call.1} parent=1 // loop_exit
      _
    %2135 = vsyncpa [#allocation3], 1
    %s2136 = scalar_lea.sflag [#allocation3], 1
    %2137 = vsyncpa %s2136, 1
    %2138 = vsyncpa [#allocation6], 1
    %s2139 = scalar_lea.sflag [#allocation6], 1
    %2140 = vsyncpa %s2139, 1
    %2141 = vsyncpa [#allocation4], 1
    %s2142 = scalar_lea.sflag [#allocation4], 1
    %2143 = vsyncpa %s2142, 1

</llo_original>
